<compile_context>
chip_gen: v7x
topology: tpu7x:2x2x1
jax: 0.10.0
libtpu: 0.0.40
codegen_flags: <defaults>
</compile_context>

<pallas_src>
import functools

import jax
import jax.numpy as jnp
import numpy as np
from jax import lax
from jax.experimental import pallas as pl
from jax.experimental.pallas import tpu as pltpu

LANES = 128          # padded channel (lane) width used inside the kernel
KH = KW = 3          # BasicBlock 3x3 convolutions


def _round_up(x, m):
    return (x + m - 1) // m * m


# ----------------------------------------------------------------------------
# Fused kernel.  One grid step == one batch image.
# ----------------------------------------------------------------------------
def _basic_block_kernel(*refs, R, Ho, Wo, n_off1, kc_pad, has_sc, sc_off,
                        concat1):
    f32, bf16 = jnp.float32, jnp.bfloat16
    if has_sc:
        (xs_ref, w1_ref, w2_ref, wsc_ref,
         s1_ref, b1_ref, s2_ref, b2_ref, ssc_ref, bsc_ref,
         out_ref, y1p_ref) = refs
    else:
        (xs_ref, w1_ref, w2_ref,
         s1_ref, b1_ref, s2_ref, b2_ref,
         out_ref, y1p_ref) = refs

    s1, b1 = s1_ref[...], b1_ref[...]
    s2, b2 = s2_ref[...], b2_ref[...]
    sc_oi, sc_oj = sc_off

    # Halo-only zeroing of the conv2 input scratch; the interior is fully
    # overwritten by phase 1 on every grid step.
    zrow = jnp.zeros((1, Wo + 2, LANES), bf16)
    y1p_ref[pl.ds(0, 1), :, :] = zrow
    y1p_ref[pl.ds(Ho + 1, 1), :, :] = zrow
    zcol = jnp.zeros((Ho + 2, 1, LANES), bf16)
    y1p_ref[:, pl.ds(0, 1), :] = zcol
    y1p_ref[:, pl.ds(Wo + 1, 1), :] = zcol

    nb = (Ho + R - 1) // R   # number of row blocks (last block clamps/overlaps)

    # ---- phase 1: conv1 + BN1 + ReLU -> y1p (bf16, 1-px zero halo) ---------
    def phase1(r0):
        acc = jnp.zeros((R * Wo, LANES), f32)
        for oi in range(n_off1):
            if concat1:
                a = jnp.concatenate(
                    [xs_ref[0, pl.ds(r0 + oi, R), pl.ds(oj, Wo), :].astype(bf16)
                     for oj in range(n_off1)], axis=-1)
                acc += jnp.dot(a.reshape(R * Wo, n_off1 * kc_pad), w1_ref[oi],
                               preferred_element_type=f32)
            else:
                for oj in range(n_off1):
                    a = xs_ref[0, pl.ds(r0 + oi, R), pl.ds(oj, Wo), :].astype(bf16)
                    acc += jnp.dot(a.reshape(R * Wo, kc_pad),
                                   w1_ref[oi, oj * kc_pad:(oj + 1) * kc_pad, :],
                                   preferred_element_type=f32)
        y1 = jnp.maximum(acc * s1 + b1, 0.0).astype(bf16)
        y1p_ref[pl.ds(r0 + 1, R), pl.ds(1, Wo), :] = y1.reshape(R, Wo, LANES)

    # ---- phase 2: conv2 + BN2 + shortcut + residual add + ReLU -> out ------
    def phase2(r0):
        acc = jnp.zeros((R * Wo, LANES), f32)
        for di in range(KH):
            a = jnp.concatenate(
                [y1p_ref[pl.ds(r0 + di, R), pl.ds(dj, Wo), :] for dj in range(KW)],
                axis=-1)
            acc += jnp.dot(a.reshape(R * Wo, KW * LANES), w2_ref[di],
                           preferred_element_type=f32)
        res = acc * s2 + b2

        a_sc = xs_ref[0, pl.ds(r0 + sc_oi, R), pl.ds(sc_oj, Wo), :]
        if has_sc:
            sc = jnp.dot(a_sc.reshape(R * Wo, kc_pad).astype(bf16), wsc_ref[...],
                         preferred_element_type=f32) * ssc_ref[...] + bsc_ref[...]
        else:
            # identity shortcut fast path: exact f32 copy, no matmul.
            sc = a_sc.reshape(R * Wo, LANES).astype(f32)

        start = r0 * Wo
        if Wo % 8 == 0 and not isinstance(start, int):
            start = pl.multiple_of(start, 8)
        out_ref[0, pl.ds(start, R * Wo), :] = jnp.maximum(res + sc, 0.0)

    def run(phase):
        if nb == 1:
            phase(0)
        else:
            def body(b, carry):
                phase(jnp.minimum(b * R, Ho - R))
                return carry
            lax.fori_loop(0, nb, body, 0)

    run(phase1)
    run(phase2)


# ----------------------------------------------------------------------------
# Weight / BN preparation (pure-JAX glue, all shapes static)
# ----------------------------------------------------------------------------
def _fold_bn(bn, cop, eps=1e-5):
    gamma, beta, mean, var = bn
    scale = gamma * lax.rsqrt(var + eps)
    bias = beta - mean * scale
    c = gamma.shape[0]
    sp = jnp.zeros((1, cop), jnp.float32).at[0, :c].set(scale)
    bp = jnp.zeros((1, cop), jnp.float32).at[0, :c].set(bias)
    return sp, bp


def _conv3x3_weights(w, s, kc_pad, cop):
    """(Cout, Cin, 3, 3) -> (n_off, n_off*kc_pad, cop) bf16 GEMM slabs.

    Slab oi holds every tap of conv row-offset oi; inside a slab, rows
    [oj*kc_pad + (pi*s+pj)*Cin : +Cin] hold tap (di, dj) = (s*oi+pi, s*oj+pj)
    transposed, matching the lane-concatenated space-to-depth activations.
    """
    cout, cin, kh, kw = w.shape
    n_off = (kh - 1) // s + 1
    wt = jnp.zeros((n_off, n_off * kc_pad, cop), jnp.float32)
    for oi in range(n_off):
        for oj in range(n_off):
            for pi in range(s):
                for pj in range(s):
                    di, dj = s * oi + pi, s * oj + pj
                    if di >= kh or dj >= kw:
                        continue
                    r0 = oj * kc_pad + (pi * s + pj) * cin
                    wt = wt.at[oi, r0:r0 + cin, :cout].set(w[:, :, di, dj].T)
    return wt.astype(jnp.bfloat16), n_off


def _shortcut_weight(w_sc, s, cin, cout, kc_pad, cop):
    w = w_sc[:, :, 0, 0]                                  # (Cout, Cin)
    oi, pi = 1 // s, 1 % s                                # x[s*ho] == xp[s*ho+1]
    r0 = (pi * s + pi) * cin
    wsc = jnp.zeros((kc_pad, cop), jnp.float32).at[r0:r0 + cin, :cout].set(w.T)
    return wsc.astype(jnp.bfloat16), (oi, oi)


# ----------------------------------------------------------------------------
# BasicBlock forward (Pallas)
# ----------------------------------------------------------------------------
def basic_block_forward(x_nchw, params, stride):
    N, Cin, H, W = x_nchw.shape
    Cout = params["w1"].shape[0]
    s = stride
    has_sc = "w_sc" in params
    assert s in (1, 2), "BasicBlock uses stride 1 or 2"
    assert Cout <= LANES, "Cout > 128 needs lane tiling (not implemented)"
    Hp, Wp = H + 2, W + 2
    assert Hp % s == 0 and Wp % s == 0
    Ho = (Hp - KH) // s + 1
    Wo = (Wp - KW) // s + 1
    Hs, Ws = Hp // s, Wp // s
    Kc = s * s * Cin

    if has_sc:
        kc_pad = _round_up(max(Kc, 8), 8)
        xs_dtype = jnp.bfloat16      # halve the input DMA; shortcut is a conv anyway
    else:
        assert Cin == Cout and Cin <= LANES
        kc_pad = LANES               # identity residual copied straight out of xs
        xs_dtype = jnp.float32       # keep the residual exactly f32 (PyTorch parity)

    # TODO(synk): NCHW<->NHWC transposes kept only to match the PyTorch
    # interface; drop them if the caller already provides NHWC.
    x_nhwc = jnp.transpose(x_nchw, (0, 2, 3, 1))
    xp = jnp.pad(x_nhwc, ((0, 0), (1, 1), (1, 1), (0, 0)))

    # Single-copy space-to-depth re-phasing (NOT an im2col blow-up): stride-s
    # 3x3 conv taps become unit-stride window matmuls inside the kernel.
    xs = xp.reshape(N, Hs, s, Ws, s, Cin).transpose(0, 1, 3, 2, 4, 5)
    xs = xs.reshape(N, Hs, Ws, Kc)
    if kc_pad != Kc:
        xs = jnp.pad(xs, ((0, 0), (0, 0), (0, 0), (0, kc_pad - Kc)))
    xs = xs.astype(xs_dtype)

    w1, n_off1 = _conv3x3_weights(params["w1"], s, kc_pad, LANES)
    w2, _ = _conv3x3_weights(params["w2"], 1, LANES, LANES)
    s1, b1 = _fold_bn(params["bn1"], LANES)
    s2, b2 = _fold_bn(params["bn2"], LANES)

    # Row-block size: M = R*Wo ~ 256 keeps the 256x256 (v6e/v7x) MXU fed.
    R = min(Ho, max(1, -(-256 // Wo)))
    concat1 = (kc_pad % LANES == 0)      # lane-aligned K-concat for conv1 taps

    inputs = [xs, w1, w2]
    in_specs = [
        pl.BlockSpec((1, Hs, Ws, kc_pad), lambda b: (b, 0, 0, 0)),
        pl.BlockSpec(w1.shape, lambda b: (0, 0, 0)),
        pl.BlockSpec(w2.shape, lambda b: (0, 0, 0)),
    ]
    if has_sc:
        wsc, sc_off = _shortcut_weight(params["w_sc"], s, Cin, Cout, kc_pad, LANES)
        ssc, bsc = _fold_bn(params["bn_sc"], LANES)
        inputs.append(wsc)
        in_specs.append(pl.BlockSpec(wsc.shape, lambda b: (0, 0)))
    else:
        sc_off = (1, 1)

    vec_spec = lambda: pl.BlockSpec((1, LANES), lambda b: (0, 0))
    inputs += [s1, b1, s2, b2]
    in_specs += [vec_spec() for _ in range(4)]
    if has_sc:
        inputs += [ssc, bsc]
        in_specs += [vec_spec(), vec_spec()]

    kernel = functools.partial(
        _basic_block_kernel, R=R, Ho=Ho, Wo=Wo, n_off1=n_off1, kc_pad=kc_pad,
        has_sc=has_sc, sc_off=sc_off, concat1=concat1)

    grid_spec = pltpu.PrefetchScalarGridSpec(
        num_scalar_prefetch=0,
        grid=(N,),
        in_specs=in_specs,
        out_specs=pl.BlockSpec((1, Ho * Wo, LANES), lambda b: (b, 0, 0)),
        scratch_shapes=[pltpu.VMEM((Ho + 2, Wo + 2, LANES), jnp.bfloat16)],
    )

    out = pl.pallas_call(
        kernel,
        out_shape=jax.ShapeDtypeStruct((N, Ho * Wo, LANES), jnp.float32),
        grid_spec=grid_spec,
        compiler_params=pltpu.CompilerParams(
            dimension_semantics=("parallel",)),
    )(*inputs)

    out = out[:, :, :Cout].reshape(N, Ho, Wo, Cout)
    return jnp.transpose(out, (0, 3, 1, 2))              # back to NCHW


# ----------------------------------------------------------------------------
# Pure-JAX reference (correctness check)
# ----------------------------------------------------------------------------
def conv2d_ref(x_nchw, w, stride, padding):
    return lax.conv_general_dilated(
        x_nchw, w, (stride, stride), [(padding, padding)] * 2,
        dimension_numbers=("NCHW", "OIHW", "NCHW"))


def bn_ref(x_nchw, gamma, beta, mean, var, eps=1e-5):
    sc = gamma / jnp.sqrt(var + eps)
    b = beta - mean * sc
    return x_nchw * sc[None, :, None, None] + b[None, :, None, None]


def basic_block_ref(x, params, stride):
    y = conv2d_ref(x, params["w1"], stride, 1)
    y = jax.nn.relu(bn_ref(y, *params["bn1"]))
    y = conv2d_ref(y, params["w2"], 1, 1)
    y = bn_ref(y, *params["bn2"])
    if "w_sc" in params:
        sc = bn_ref(conv2d_ref(x, params["w_sc"], stride, 0), *params["bn_sc"])
    else:
        sc = x
    return jax.nn.relu(y + sc)


# ----------------------------------------------------------------------------
def make_params(key, in_ch, out_ch, stride):
    ks = jax.random.split(key, 12)

    def bn_params(k0, k1, k2, k3, c):
        gamma = jax.random.uniform(k0, (c,), jnp.float32, 0.5, 1.5)
        beta = 0.1 * jax.random.normal(k1, (c,), jnp.float32)
        mean = 0.1 * jax.random.normal(k2, (c,), jnp.float32)
        var = jax.random.uniform(k3, (c,), jnp.float32, 0.5, 1.5)
        return (gamma, beta, mean, var)

    params = {
        "w1": 0.2 * jax.random.normal(ks[0], (out_ch, in_ch, 3, 3), jnp.float32),
        "bn1": bn_params(ks[1], ks[2], ks[3], ks[4], out_ch),
        "w2": 0.2 * jax.random.normal(ks[5], (out_ch, out_ch, 3, 3), jnp.float32),
        "bn2": bn_params(ks[6], ks[7], ks[8], ks[9], out_ch),
    }
    if stride != 1 or in_ch != out_ch:
        params["w_sc"] = 0.2 * jax.random.normal(
            ks[10], (out_ch, in_ch, 1, 1), jnp.float32)
        params["bn_sc"] = bn_params(ks[11], ks[1], ks[5], ks[0], out_ch)
    return params


if __name__ == "__main__":
    key = jax.random.PRNGKey(0)
    kx, kp, kx2, kp2 = jax.random.split(key, 4)

    fwd = jax.jit(basic_block_forward, static_argnums=2)

    # ---- conv-shortcut path: stride 2, 4 -> 8 channels ---------------------
    N, Cin, H, W = 2, 4, 16, 16
    out_ch, stride = 8, 2
    x = jax.random.normal(kx, (N, Cin, H, W), jnp.float32)
    params = make_params(kp, Cin, out_ch, stride)
    out = jax.block_until_ready(fwd(x, params, stride))
    ref = jax.block_until_ready(basic_block_ref(x, params, stride))
    assert out.shape == (N, out_ch, H // stride, W // stride), out.shape
    # bf16 MXU inputs (f32 accumulation) -> loosened tolerance vs f32 ref.
    np.testing.assert_allclose(np.asarray(out), np.asarray(ref),
                               rtol=5e-2, atol=5e-2)

    # ---- identity-shortcut fast path: stride 1, 8 -> 8 channels ------------
    Cin2 = out_ch2 = 8
    x2 = jax.random.normal(kx2, (N, Cin2, H, W), jnp.float32)
    params2 = make_params(kp2, Cin2, out_ch2, 1)
    out2 = jax.block_until_ready(fwd(x2, params2, 1))
    ref2 = jax.block_until_ready(basic_block_ref(x2, params2, 1))
    assert out2.shape == (N, out_ch2, H, W), out2.shape
    np.testing.assert_allclose(np.asarray(out2), np.asarray(ref2),
                               rtol=5e-2, atol=5e-2)

    print("KERNEL_OK")
</pallas_src>

<mosaic_0001>
module attributes {stable_mosaic.version = 11 : i64} {
  func.func @_basic_block_kernel(%arg0: i32, %arg1: memref<1x9x9x16xbf16, #tpu.memory_space<vmem>>, %arg2: memref<2x32x128xbf16, #tpu.memory_space<vmem>>, %arg3: memref<3x384x128xbf16, #tpu.memory_space<vmem>>, %arg4: memref<16x128xbf16, #tpu.memory_space<vmem>>, %arg5: memref<1x128xf32, #tpu.memory_space<vmem>>, %arg6: memref<1x128xf32, #tpu.memory_space<vmem>>, %arg7: memref<1x128xf32, #tpu.memory_space<vmem>>, %arg8: memref<1x128xf32, #tpu.memory_space<vmem>>, %arg9: memref<1x128xf32, #tpu.memory_space<vmem>>, %arg10: memref<1x128xf32, #tpu.memory_space<vmem>>, %arg11: memref<1x64x128xf32, #tpu.memory_space<vmem>>, %arg12: memref<10x10x128xbf16, #tpu.memory_space<vmem>>) attributes {dimension_semantics = [#tpu.dimension_semantics<parallel>], iteration_bounds = array<i64: 2>, scalar_prefetch = 0 : i64, scratch_operands = 1 : i64, tpu.core_type = #tpu.core_type<tc>, window_params = [{transform_indices = @transform_0, window_bounds = array<i64: 1, 9, 9, 16>}, {pipeline_mode = #tpu.pipeline_mode<synchronous>, transform_indices = @transform_1, window_bounds = array<i64: 2, 32, 128>}, {pipeline_mode = #tpu.pipeline_mode<synchronous>, transform_indices = @transform_2, window_bounds = array<i64: 3, 384, 128>}, {pipeline_mode = #tpu.pipeline_mode<synchronous>, transform_indices = @transform_3, window_bounds = array<i64: 16, 128>}, {pipeline_mode = #tpu.pipeline_mode<synchronous>, transform_indices = @transform_4, window_bounds = array<i64: 1, 128>}, {pipeline_mode = #tpu.pipeline_mode<synchronous>, transform_indices = @transform_5, window_bounds = array<i64: 1, 128>}, {pipeline_mode = #tpu.pipeline_mode<synchronous>, transform_indices = @transform_6, window_bounds = array<i64: 1, 128>}, {pipeline_mode = #tpu.pipeline_mode<synchronous>, transform_indices = @transform_7, window_bounds = array<i64: 1, 128>}, {pipeline_mode = #tpu.pipeline_mode<synchronous>, transform_indices = @transform_8, window_bounds = array<i64: 1, 128>}, {pipeline_mode = #tpu.pipeline_mode<synchronous>, transform_indices = @transform_9, window_bounds = array<i64: 1, 128>}, {transform_indices = @transform_10, window_bounds = array<i64: 1, 64, 128>}]} {
    %c0 = arith.constant 0 : index
    %c0_0 = arith.constant 0 : index
    %0 = vector.load %arg5[%c0, %c0_0] : memref<1x128xf32, #tpu.memory_space<vmem>>, vector<1x128xf32>
    %c0_1 = arith.constant 0 : index
    %c0_2 = arith.constant 0 : index
    %1 = vector.load %arg6[%c0_1, %c0_2] : memref<1x128xf32, #tpu.memory_space<vmem>>, vector<1x128xf32>
    %c0_3 = arith.constant 0 : index
    %c0_4 = arith.constant 0 : index
    %2 = vector.load %arg7[%c0_3, %c0_4] : memref<1x128xf32, #tpu.memory_space<vmem>>, vector<1x128xf32>
    %c0_5 = arith.constant 0 : index
    %c0_6 = arith.constant 0 : index
    %3 = vector.load %arg8[%c0_5, %c0_6] : memref<1x128xf32, #tpu.memory_space<vmem>>, vector<1x128xf32>
    %cst = arith.constant 0.000000e+00 : bf16
    %4 = vector.broadcast %cst : bf16 to vector<1x10x128xbf16>
    %c0_7 = arith.constant 0 : index
    %c0_8 = arith.constant 0 : index
    %c0_9 = arith.constant 0 : index
    %5 = vector.load %arg12[%c0_7, %c0_8, %c0_9] : memref<10x10x128xbf16, #tpu.memory_space<vmem>>, vector<1x10x128xbf16>
    tpu.vector_store %arg12[%c0_7, %c0_8, %c0_9], %4 {strides = array<i32>} : memref<10x10x128xbf16, #tpu.memory_space<vmem>>, vector<1x10x128xbf16>,
    %c9 = arith.constant 9 : index
    %c0_10 = arith.constant 0 : index
    %c0_11 = arith.constant 0 : index
    %6 = vector.load %arg12[%c9, %c0_10, %c0_11] : memref<10x10x128xbf16, #tpu.memory_space<vmem>>, vector<1x10x128xbf16>
    tpu.vector_store %arg12[%c9, %c0_10, %c0_11], %4 {strides = array<i32>} : memref<10x10x128xbf16, #tpu.memory_space<vmem>>, vector<1x10x128xbf16>,
    %cst_12 = arith.constant 0.000000e+00 : bf16
    %7 = vector.broadcast %cst_12 : bf16 to vector<10x1x128xbf16>
    %c0_13 = arith.constant 0 : index
    %c0_14 = arith.constant 0 : index
    %c0_15 = arith.constant 0 : index
    %8 = vector.load %arg12[%c0_13, %c0_14, %c0_15] : memref<10x10x128xbf16, #tpu.memory_space<vmem>>, vector<10x1x128xbf16>
    tpu.vector_store %arg12[%c0_13, %c0_14, %c0_15], %7 {strides = array<i32>} : memref<10x10x128xbf16, #tpu.memory_space<vmem>>, vector<10x1x128xbf16>,
    %c0_16 = arith.constant 0 : index
    %c9_17 = arith.constant 9 : index
    %c0_18 = arith.constant 0 : index
    %9 = vector.load %arg12[%c0_16, %c9_17, %c0_18] : memref<10x10x128xbf16, #tpu.memory_space<vmem>>, vector<10x1x128xbf16>
    tpu.vector_store %arg12[%c0_16, %c9_17, %c0_18], %7 {strides = array<i32>} : memref<10x10x128xbf16, #tpu.memory_space<vmem>>, vector<10x1x128xbf16>,
    %cst_19 = arith.constant 0.000000e+00 : f32
    %10 = vector.broadcast %cst_19 : f32 to vector<64x128xf32>
    %c0_20 = arith.constant 0 : index
    %c0_21 = arith.constant 0 : index
    %c0_22 = arith.constant 0 : index
    %c0_23 = arith.constant 0 : index
    %11 = vector.load %arg1[%c0_20, %c0_21, %c0_22, %c0_23] : memref<1x9x9x16xbf16, #tpu.memory_space<vmem>>, vector<1x8x8x16xbf16>
    %12 = vector.shape_cast %11 : vector<1x8x8x16xbf16> to vector<8x8x16xbf16>
    %13 = vector.shape_cast %12 : vector<8x8x16xbf16> to vector<64x16xbf16>
    %c0_24 = arith.constant 0 : index
    %c0_25 = arith.constant 0 : index
    %c0_26 = arith.constant 0 : index
    %14 = vector.load %arg2[%c0_24, %c0_25, %c0_26] : memref<2x32x128xbf16, #tpu.memory_space<vmem>>, vector<1x16x128xbf16>
    %15 = vector.shape_cast %14 : vector<1x16x128xbf16> to vector<16x128xbf16>
    %cst_27 = arith.constant dense<0.000000e+00> : vector<64x128xf32>
    %16 = tpu.matmul %13, %15, %cst_27 {dimension_numbers = #tpu.dot_dimension_numbers<[1], [0], [0], [1], [0, 0, 1, 1], [], []>} : vector<64x16xbf16>, vector<16x128xbf16>, vector<64x128xf32> -> vector<64x128xf32>
    %17 = arith.addf %10, %16 : vector<64x128xf32>
    %c0_28 = arith.constant 0 : index
    %c0_29 = arith.constant 0 : index
    %c1 = arith.constant 1 : index
    %c0_30 = arith.constant 0 : index
    %18 = vector.load %arg1[%c0_28, %c0_29, %c1, %c0_30] : memref<1x9x9x16xbf16, #tpu.memory_space<vmem>>, vector<1x8x8x16xbf16>
    %19 = vector.shape_cast %18 : vector<1x8x8x16xbf16> to vector<8x8x16xbf16>
    %20 = vector.shape_cast %19 : vector<8x8x16xbf16> to vector<64x16xbf16>
    %c0_31 = arith.constant 0 : index
    %c16 = arith.constant 16 : index
    %c0_32 = arith.constant 0 : index
    %21 = vector.load %arg2[%c0_31, %c16, %c0_32] : memref<2x32x128xbf16, #tpu.memory_space<vmem>>, vector<1x16x128xbf16>
    %22 = vector.shape_cast %21 : vector<1x16x128xbf16> to vector<16x128xbf16>
    %cst_33 = arith.constant dense<0.000000e+00> : vector<64x128xf32>
    %23 = tpu.matmul %20, %22, %cst_33 {dimension_numbers = #tpu.dot_dimension_numbers<[1], [0], [0], [1], [0, 0, 1, 1], [], []>} : vector<64x16xbf16>, vector<16x128xbf16>, vector<64x128xf32> -> vector<64x128xf32>
    %24 = arith.addf %17, %23 : vector<64x128xf32>
    %c0_34 = arith.constant 0 : index
    %c1_35 = arith.constant 1 : index
    %c0_36 = arith.constant 0 : index
    %c0_37 = arith.constant 0 : index
    %25 = vector.load %arg1[%c0_34, %c1_35, %c0_36, %c0_37] : memref<1x9x9x16xbf16, #tpu.memory_space<vmem>>, vector<1x8x8x16xbf16>
    %26 = vector.shape_cast %25 : vector<1x8x8x16xbf16> to vector<8x8x16xbf16>
    %27 = vector.shape_cast %26 : vector<8x8x16xbf16> to vector<64x16xbf16>
    %c1_38 = arith.constant 1 : index
    %c0_39 = arith.constant 0 : index
    %c0_40 = arith.constant 0 : index
    %28 = vector.load %arg2[%c1_38, %c0_39, %c0_40] : memref<2x32x128xbf16, #tpu.memory_space<vmem>>, vector<1x16x128xbf16>
    %29 = vector.shape_cast %28 : vector<1x16x128xbf16> to vector<16x128xbf16>
    %cst_41 = arith.constant dense<0.000000e+00> : vector<64x128xf32>
    %30 = tpu.matmul %27, %29, %cst_41 {dimension_numbers = #tpu.dot_dimension_numbers<[1], [0], [0], [1], [0, 0, 1, 1], [], []>} : vector<64x16xbf16>, vector<16x128xbf16>, vector<64x128xf32> -> vector<64x128xf32>
    %31 = arith.addf %24, %30 : vector<64x128xf32>
    %c0_42 = arith.constant 0 : index
    %c1_43 = arith.constant 1 : index
    %c1_44 = arith.constant 1 : index
    %c0_45 = arith.constant 0 : index
    %32 = vector.load %arg1[%c0_42, %c1_43, %c1_44, %c0_45] : memref<1x9x9x16xbf16, #tpu.memory_space<vmem>>, vector<1x8x8x16xbf16>
    %33 = vector.shape_cast %32 : vector<1x8x8x16xbf16> to vector<8x8x16xbf16>
    %34 = vector.shape_cast %33 : vector<8x8x16xbf16> to vector<64x16xbf16>
    %c1_46 = arith.constant 1 : index
    %c16_47 = arith.constant 16 : index
    %c0_48 = arith.constant 0 : index
    %35 = vector.load %arg2[%c1_46, %c16_47, %c0_48] : memref<2x32x128xbf16, #tpu.memory_space<vmem>>, vector<1x16x128xbf16>
    %36 = vector.shape_cast %35 : vector<1x16x128xbf16> to vector<16x128xbf16>
    %cst_49 = arith.constant dense<0.000000e+00> : vector<64x128xf32>
    %37 = tpu.matmul %34, %36, %cst_49 {dimension_numbers = #tpu.dot_dimension_numbers<[1], [0], [0], [1], [0, 0, 1, 1], [], []>} : vector<64x16xbf16>, vector<16x128xbf16>, vector<64x128xf32> -> vector<64x128xf32>
    %38 = arith.addf %31, %37 : vector<64x128xf32>
    %39 = vector.broadcast %0 : vector<1x128xf32> to vector<64x128xf32>
    %40 = arith.mulf %38, %39 : vector<64x128xf32>
    %41 = vector.broadcast %1 : vector<1x128xf32> to vector<64x128xf32>
    %42 = arith.addf %40, %41 : vector<64x128xf32>
    %cst_50 = arith.constant 0.000000e+00 : f32
    %43 = vector.broadcast %cst_50 : f32 to vector<64x128xf32>
    %44 = arith.maximumf %42, %43 : vector<64x128xf32>
    %45 = arith.truncf %44 : vector<64x128xf32> to vector<64x128xbf16>
    %46 = vector.shape_cast %45 : vector<64x128xbf16> to vector<8x8x128xbf16>
    %c1_51 = arith.constant 1 : index
    %c1_52 = arith.constant 1 : index
    %c0_53 = arith.constant 0 : index
    %47 = vector.load %arg12[%c1_51, %c1_52, %c0_53] : memref<10x10x128xbf16, #tpu.memory_space<vmem>>, vector<8x8x128xbf16>
    tpu.vector_store %arg12[%c1_51, %c1_52, %c0_53], %46 {strides = array<i32>} : memref<10x10x128xbf16, #tpu.memory_space<vmem>>, vector<8x8x128xbf16>,
    %cst_54 = arith.constant 0.000000e+00 : f32
    %48 = vector.broadcast %cst_54 : f32 to vector<64x128xf32>
    %c0_55 = arith.constant 0 : index
    %c0_56 = arith.constant 0 : index
    %c0_57 = arith.constant 0 : index
    %49 = vector.load %arg12[%c0_55, %c0_56, %c0_57] : memref<10x10x128xbf16, #tpu.memory_space<vmem>>, vector<8x8x128xbf16>
    %c0_58 = arith.constant 0 : index
    %c1_59 = arith.constant 1 : index
    %c0_60 = arith.constant 0 : index
    %50 = vector.load %arg12[%c0_58, %c1_59, %c0_60] : memref<10x10x128xbf16, #tpu.memory_space<vmem>>, vector<8x8x128xbf16>
    %c0_61 = arith.constant 0 : index
    %c2 = arith.constant 2 : index
    %c0_62 = arith.constant 0 : index
    %51 = vector.load %arg12[%c0_61, %c2, %c0_62] : memref<10x10x128xbf16, #tpu.memory_space<vmem>>, vector<8x8x128xbf16>
    %52 = tpu.concatenate %49, %50, %51 in 2 : vector<8x8x128xbf16>, vector<8x8x128xbf16>, vector<8x8x128xbf16> -> vector<8x8x384xbf16>
    %53 = vector.shape_cast %52 : vector<8x8x384xbf16> to vector<64x384xbf16>
    %c0_63 = arith.constant 0 : index
    %c0_64 = arith.constant 0 : index
    %c0_65 = arith.constant 0 : index
    %54 = vector.load %arg3[%c0_63, %c0_64, %c0_65] : memref<3x384x128xbf16, #tpu.memory_space<vmem>>, vector<1x384x128xbf16>
    %55 = vector.shape_cast %54 : vector<1x384x128xbf16> to vector<384x128xbf16>
    %cst_66 = arith.constant dense<0.000000e+00> : vector<64x128xf32>
    %56 = tpu.matmul %53, %55, %cst_66 {dimension_numbers = #tpu.dot_dimension_numbers<[1], [0], [0], [1], [0, 0, 1, 1], [], []>} : vector<64x384xbf16>, vector<384x128xbf16>, vector<64x128xf32> -> vector<64x128xf32>
    %57 = arith.addf %48, %56 : vector<64x128xf32>
    %c1_67 = arith.constant 1 : index
    %c0_68 = arith.constant 0 : index
    %c0_69 = arith.constant 0 : index
    %58 = vector.load %arg12[%c1_67, %c0_68, %c0_69] : memref<10x10x128xbf16, #tpu.memory_space<vmem>>, vector<8x8x128xbf16>
    %c1_70 = arith.constant 1 : index
    %c1_71 = arith.constant 1 : index
    %c0_72 = arith.constant 0 : index
    %59 = vector.load %arg12[%c1_70, %c1_71, %c0_72] : memref<10x10x128xbf16, #tpu.memory_space<vmem>>, vector<8x8x128xbf16>
    %c1_73 = arith.constant 1 : index
    %c2_74 = arith.constant 2 : index
    %c0_75 = arith.constant 0 : index
    %60 = vector.load %arg12[%c1_73, %c2_74, %c0_75] : memref<10x10x128xbf16, #tpu.memory_space<vmem>>, vector<8x8x128xbf16>
    %61 = tpu.concatenate %58, %59, %60 in 2 : vector<8x8x128xbf16>, vector<8x8x128xbf16>, vector<8x8x128xbf16> -> vector<8x8x384xbf16>
    %62 = vector.shape_cast %61 : vector<8x8x384xbf16> to vector<64x384xbf16>
    %c1_76 = arith.constant 1 : index
    %c0_77 = arith.constant 0 : index
    %c0_78 = arith.constant 0 : index
    %63 = vector.load %arg3[%c1_76, %c0_77, %c0_78] : memref<3x384x128xbf16, #tpu.memory_space<vmem>>, vector<1x384x128xbf16>
    %64 = vector.shape_cast %63 : vector<1x384x128xbf16> to vector<384x128xbf16>
    %cst_79 = arith.constant dense<0.000000e+00> : vector<64x128xf32>
    %65 = tpu.matmul %62, %64, %cst_79 {dimension_numbers = #tpu.dot_dimension_numbers<[1], [0], [0], [1], [0, 0, 1, 1], [], []>} : vector<64x384xbf16>, vector<384x128xbf16>, vector<64x128xf32> -> vector<64x128xf32>
    %66 = arith.addf %57, %65 : vector<64x128xf32>
    %c2_80 = arith.constant 2 : index
    %c0_81 = arith.constant 0 : index
    %c0_82 = arith.constant 0 : index
    %67 = vector.load %arg12[%c2_80, %c0_81, %c0_82] : memref<10x10x128xbf16, #tpu.memory_space<vmem>>, vector<8x8x128xbf16>
    %c2_83 = arith.constant 2 : index
    %c1_84 = arith.constant 1 : index
    %c0_85 = arith.constant 0 : index
    %68 = vector.load %arg12[%c2_83, %c1_84, %c0_85] : memref<10x10x128xbf16, #tpu.memory_space<vmem>>, vector<8x8x128xbf16>
    %c2_86 = arith.constant 2 : index
    %c2_87 = arith.constant 2 : index
    %c0_88 = arith.constant 0 : index
    %69 = vector.load %arg12[%c2_86, %c2_87, %c0_88] : memref<10x10x128xbf16, #tpu.memory_space<vmem>>, vector<8x8x128xbf16>
    %70 = tpu.concatenate %67, %68, %69 in 2 : vector<8x8x128xbf16>, vector<8x8x128xbf16>, vector<8x8x128xbf16> -> vector<8x8x384xbf16>
    %71 = vector.shape_cast %70 : vector<8x8x384xbf16> to vector<64x384xbf16>
    %c2_89 = arith.constant 2 : index
    %c0_90 = arith.constant 0 : index
    %c0_91 = arith.constant 0 : index
    %72 = vector.load %arg3[%c2_89, %c0_90, %c0_91] : memref<3x384x128xbf16, #tpu.memory_space<vmem>>, vector<1x384x128xbf16>
    %73 = vector.shape_cast %72 : vector<1x384x128xbf16> to vector<384x128xbf16>
    %cst_92 = arith.constant dense<0.000000e+00> : vector<64x128xf32>
    %74 = tpu.matmul %71, %73, %cst_92 {dimension_numbers = #tpu.dot_dimension_numbers<[1], [0], [0], [1], [0, 0, 1, 1], [], []>} : vector<64x384xbf16>, vector<384x128xbf16>, vector<64x128xf32> -> vector<64x128xf32>
    %75 = arith.addf %66, %74 : vector<64x128xf32>
    %76 = vector.broadcast %2 : vector<1x128xf32> to vector<64x128xf32>
    %77 = arith.mulf %75, %76 : vector<64x128xf32>
    %78 = vector.broadcast %3 : vector<1x128xf32> to vector<64x128xf32>
    %79 = arith.addf %77, %78 : vector<64x128xf32>
    %c0_93 = arith.constant 0 : index
    %c0_94 = arith.constant 0 : index
    %c0_95 = arith.constant 0 : index
    %c0_96 = arith.constant 0 : index
    %80 = vector.load %arg1[%c0_93, %c0_94, %c0_95, %c0_96] : memref<1x9x9x16xbf16, #tpu.memory_space<vmem>>, vector<1x8x8x16xbf16>
    %81 = vector.shape_cast %80 : vector<1x8x8x16xbf16> to vector<8x8x16xbf16>
    %82 = vector.shape_cast %81 : vector<8x8x16xbf16> to vector<64x16xbf16>
    %c0_97 = arith.constant 0 : index
    %c0_98 = arith.constant 0 : index
    %83 = vector.load %arg4[%c0_97, %c0_98] : memref<16x128xbf16, #tpu.memory_space<vmem>>, vector<16x128xbf16>
    %cst_99 = arith.constant dense<0.000000e+00> : vector<64x128xf32>
    %84 = tpu.matmul %82, %83, %cst_99 {dimension_numbers = #tpu.dot_dimension_numbers<[1], [0], [0], [1], [0, 0, 1, 1], [], []>} : vector<64x16xbf16>, vector<16x128xbf16>, vector<64x128xf32> -> vector<64x128xf32>
    %c0_100 = arith.constant 0 : index
    %c0_101 = arith.constant 0 : index
    %85 = vector.load %arg9[%c0_100, %c0_101] : memref<1x128xf32, #tpu.memory_space<vmem>>, vector<1x128xf32>
    %86 = vector.broadcast %85 : vector<1x128xf32> to vector<64x128xf32>
    %87 = arith.mulf %84, %86 : vector<64x128xf32>
    %c0_102 = arith.constant 0 : index
    %c0_103 = arith.constant 0 : index
    %88 = vector.load %arg10[%c0_102, %c0_103] : memref<1x128xf32, #tpu.memory_space<vmem>>, vector<1x128xf32>
    %89 = vector.broadcast %88 : vector<1x128xf32> to vector<64x128xf32>
    %90 = arith.addf %87, %89 : vector<64x128xf32>
    %91 = arith.addf %79, %90 : vector<64x128xf32>
    %cst_104 = arith.constant 0.000000e+00 : f32
    %92 = vector.broadcast %cst_104 : f32 to vector<64x128xf32>
    %93 = arith.maximumf %91, %92 : vector<64x128xf32>
    %c0_105 = arith.constant 0 : index
    %c0_106 = arith.constant 0 : index
    %c0_107 = arith.constant 0 : index
    %94 = vector.load %arg11[%c0_105, %c0_106, %c0_107] : memref<1x64x128xf32, #tpu.memory_space<vmem>>, vector<1x64x128xf32>
    %95 = vector.shape_cast %94 : vector<1x64x128xf32> to vector<64x128xf32>
    %96 = vector.shape_cast %93 : vector<64x128xf32> to vector<1x64x128xf32>
    tpu.vector_store %arg11[%c0_105, %c0_106, %c0_107], %96 {strides = array<i32>} : memref<1x64x128xf32, #tpu.memory_space<vmem>>, vector<1x64x128xf32>,
    return
  }
  func.func @transform_0(%arg0: i32) -> (i32, i32, i32, i32) {
    %c0_i32 = arith.constant 0 : i32
    %c0_i32_0 = arith.constant 0 : i32
    %c0_i32_1 = arith.constant 0 : i32
    %c0_i32_2 = arith.constant 0 : i32
    return %arg0, %c0_i32, %c0_i32_0, %c0_i32_1 : i32, i32, i32, i32
  }
  func.func @transform_1(%arg0: i32) -> (i32, i32, i32) {
    %c0_i32 = arith.constant 0 : i32
    %c0_i32_0 = arith.constant 0 : i32
    %c0_i32_1 = arith.constant 0 : i32
    %c0_i32_2 = arith.constant 0 : i32
    return %c0_i32, %c0_i32_0, %c0_i32_1 : i32, i32, i32
  }
  func.func @transform_2(%arg0: i32) -> (i32, i32, i32) {
    %c0_i32 = arith.constant 0 : i32
    %c0_i32_0 = arith.constant 0 : i32
    %c0_i32_1 = arith.constant 0 : i32
    %c0_i32_2 = arith.constant 0 : i32
    return %c0_i32, %c0_i32_0, %c0_i32_1 : i32, i32, i32
  }
  func.func @transform_3(%arg0: i32) -> (i32, i32) {
    %c0_i32 = arith.constant 0 : i32
    %c0_i32_0 = arith.constant 0 : i32
    %c0_i32_1 = arith.constant 0 : i32
    return %c0_i32, %c0_i32_0 : i32, i32
  }
  func.func @transform_4(%arg0: i32) -> (i32, i32) {
    %c0_i32 = arith.constant 0 : i32
    %c0_i32_0 = arith.constant 0 : i32
    %c0_i32_1 = arith.constant 0 : i32
    return %c0_i32, %c0_i32_0 : i32, i32
  }
  func.func @transform_5(%arg0: i32) -> (i32, i32) {
    %c0_i32 = arith.constant 0 : i32
    %c0_i32_0 = arith.constant 0 : i32
    %c0_i32_1 = arith.constant 0 : i32
    return %c0_i32, %c0_i32_0 : i32, i32
  }
  func.func @transform_6(%arg0: i32) -> (i32, i32) {
    %c0_i32 = arith.constant 0 : i32
    %c0_i32_0 = arith.constant 0 : i32
    %c0_i32_1 = arith.constant 0 : i32
    return %c0_i32, %c0_i32_0 : i32, i32
  }
  func.func @transform_7(%arg0: i32) -> (i32, i32) {
    %c0_i32 = arith.constant 0 : i32
    %c0_i32_0 = arith.constant 0 : i32
    %c0_i32_1 = arith.constant 0 : i32
    return %c0_i32, %c0_i32_0 : i32, i32
  }
  func.func @transform_8(%arg0: i32) -> (i32, i32) {
    %c0_i32 = arith.constant 0 : i32
    %c0_i32_0 = arith.constant 0 : i32
    %c0_i32_1 = arith.constant 0 : i32
    return %c0_i32, %c0_i32_0 : i32, i32
  }
  func.func @transform_9(%arg0: i32) -> (i32, i32) {
    %c0_i32 = arith.constant 0 : i32
    %c0_i32_0 = arith.constant 0 : i32
    %c0_i32_1 = arith.constant 0 : i32
    return %c0_i32, %c0_i32_0 : i32, i32
  }
  func.func @transform_10(%arg0: i32) -> (i32, i32, i32) {
    %c0_i32 = arith.constant 0 : i32
    %c0_i32_0 = arith.constant 0 : i32
    %c0_i32_1 = arith.constant 0 : i32
    return %arg0, %c0_i32, %c0_i32_0 : i32, i32, i32
  }
}

</mosaic_0001>

<llo_original>
// kernel: basic_block_forward.1
$region0: #{basic_block_forward.1}
  #allocation0 [shape = 'u32[]', space=smem, size = 0x4, offset = 0x4, fixed_abs, tag = 'smem constant byte address 0x4 - core index']
  #allocation1 [shape = 'u32[144,128]{1,0:T(1,128)}', space=vmem, size = 0x12000, scoped, tag = 'internal scratch']
  #allocation2 [shape = 'bf16[10,10,128]{2,1,0:T(8,128)(2,1)}', space=vmem, size = 0xa000, scoped, tag = 'scratch operand']
  %s0 = inlined_call_operand.vmem [shape: bf16[2,9,9,16], index: 0, kind: input, shape index: {}]
  %s1 = inlined_call_operand.vmem [shape: bf16[2,32,128], index: 1, kind: input, shape index: {}]
  %s2 = inlined_call_operand.vmem [shape: bf16[3,384,128], index: 2, kind: input, shape index: {}]
  %s3 = inlined_call_operand.vmem [shape: bf16[16,128], index: 3, kind: input, shape index: {}]
  %s4 = inlined_call_operand.vmem [shape: f32[1,128], index: 4, kind: input, shape index: {}]
  %s5 = inlined_call_operand.vmem [shape: f32[1,128], index: 5, kind: input, shape index: {}]
  %s6 = inlined_call_operand.vmem [shape: f32[1,128], index: 6, kind: input, shape index: {}]
  %s7 = inlined_call_operand.vmem [shape: f32[1,128], index: 7, kind: input, shape index: {}]
  %s8 = inlined_call_operand.vmem [shape: f32[1,128], index: 8, kind: input, shape index: {}]
  %s9 = inlined_call_operand.vmem [shape: f32[1,128], index: 9, kind: input, shape index: {}]
  %s10 = inlined_call_operand.vmem [shape: f32[2,64,128], index: 10, kind: output, shape index: {}]
  %s11 = sld [smem:[#allocation0]]
  $region73: #{basic_block_forward.1} parent=0
    _
  %s13 = ssub.s32 1, %s11
  %s14 = scalar_select 0, %s13, %s11
  loop: start=0, step=1, limit=4
  $region2: #{basic_block_forward.1} parent=0 // loop_pre_header
    _
  $region3: #{basic_block_forward.1} parent=0 // loop_header
    %s16 = sphi 0, %s20
    %p17 = scmp.ge.s32.totalorder %s16, 4
    %s26 = sphi 0, %s28
    %s29 = sphi 0, %s26
    %s30 = sphi 0, %s29
    %s46 = sphi 0, %s30
    %s50 = sphi 0, %s50
    %s52 = sphi 0, %s50
    %s53 = sphi 0, %s52
    %s67 = sphi 0, %s53
    %s71 = sphi 0, %s71
    %s73 = sphi 0, %s71
    %s74 = sphi 0, %s73
    %s88 = sphi 0, %s74
    %s92 = sphi 0, %s92
    %s94 = sphi 0, %s92
    %s95 = sphi 0, %s94
    %s109 = sphi 0, %s95
    %s113 = sphi 0, %s113
    %s115 = sphi 0, %s113
    %s116 = sphi 0, %s115
    %s130 = sphi 0, %s116
    %s134 = sphi 0, %s134
    %s136 = sphi 0, %s134
    %s137 = sphi 0, %s136
    %s151 = sphi 0, %s137
    %s155 = sphi 0, %s155
    %s157 = sphi 0, %s155
    %s158 = sphi 0, %s157
    %s172 = sphi 0, %s158
    %s176 = sphi 0, %s176
    %s178 = sphi 0, %s176
    %s179 = sphi 0, %s178
    %s193 = sphi 0, %s179
    %s197 = sphi 0, %s197
    %s199 = sphi 0, %s197
    %s200 = sphi 0, %s199
    %s214 = sphi 0, %s200
    %s218 = sphi 0, %s218
    %s220 = sphi 0, %s218
    %s221 = sphi 0, %s220
    %s235 = sphi 0, %s221
    %s241 = sphi 0, %s243
    %s244 = sphi 0, %s241
    %s245 = sphi 0, %s244
    %s261 = sphi 0, %s245
  $region4: #{basic_block_forward.1} parent=0 // loop_header_branch
    %19 = sbr.rel (%p17) target = $region8
  $region5: #{basic_block_forward.1} parent=0 // loop_body
    %s21 = ssub.s32 %s16, 1
    %s22 = ssub.s32 %s16, 2
    %s23 = sadd.s32 %s16, 1
    %s24 = ssub.s32 %s16, %s23
    %p25 = scmp.eq.s32.totalorder %s24, 0
    %s27 = sadd.s32 %s26, 1
    %s28 = scalar_select %p25, %s26, %s27
    %p31 = pneg %p25
    %p32 = scmp.eq.s32.totalorder %s16, 1
    %p33 = por %p31, %p32
    %p34 = scmp.ne.s32.totalorder %s26, %s29
    %p35 = scmp.eq.s32.totalorder %s16, 0
    %p36 = por %p34, %p35
    %p37 = scmp.ne.s32.totalorder %s26, %s29
    %p38 = scmp.eq.s32.totalorder %s21, 1
    %p39 = por %p37, %p38
    %p40 = scmp.ne.s32.totalorder %s29, %s30
    %p41 = scmp.eq.s32.totalorder %s21, 0
    %p42 = por %p40, %p41
    %p43 = scmp.ne.s32.totalorder %s29, %s30
    %p44 = scmp.eq.s32.totalorder %s22, 1
    %p45 = por %p43, %p44
    %p47 = scmp.ne.s32.totalorder %s30, %s46
    %p48 = scmp.eq.s32.totalorder %s22, 0
    %p49 = por %p47, %p48
    %s51 = sadd.s32 %s50, 1
    %p54 = scmp.eq.s32.totalorder %s16, 1
    %p55 = scmp.ne.s32.totalorder %s50, %s52
    %p56 = scmp.eq.s32.totalorder %s16, 0
    %p57 = por %p55, %p56
    %p58 = scmp.ne.s32.totalorder %s50, %s52
    %p59 = scmp.eq.s32.totalorder %s21, 1
    %p60 = por %p58, %p59
    %p61 = scmp.ne.s32.totalorder %s52, %s53
    %p62 = scmp.eq.s32.totalorder %s21, 0
    %p63 = por %p61, %p62
    %p64 = scmp.ne.s32.totalorder %s52, %s53
    %p65 = scmp.eq.s32.totalorder %s22, 1
    %p66 = por %p64, %p65
    %p68 = scmp.ne.s32.totalorder %s53, %s67
    %p69 = scmp.eq.s32.totalorder %s22, 0
    %p70 = por %p68, %p69
    %s72 = sadd.s32 %s71, 1
    %p75 = scmp.eq.s32.totalorder %s16, 1
    %p76 = scmp.ne.s32.totalorder %s71, %s73
    %p77 = scmp.eq.s32.totalorder %s16, 0
    %p78 = por %p76, %p77
    %p79 = scmp.ne.s32.totalorder %s71, %s73
    %p80 = scmp.eq.s32.totalorder %s21, 1
    %p81 = por %p79, %p80
    %p82 = scmp.ne.s32.totalorder %s73, %s74
    %p83 = scmp.eq.s32.totalorder %s21, 0
    %p84 = por %p82, %p83
    %p85 = scmp.ne.s32.totalorder %s73, %s74
    %p86 = scmp.eq.s32.totalorder %s22, 1
    %p87 = por %p85, %p86
    %p89 = scmp.ne.s32.totalorder %s74, %s88
    %p90 = scmp.eq.s32.totalorder %s22, 0
    %p91 = por %p89, %p90
    %s93 = sadd.s32 %s92, 1
    %p96 = scmp.eq.s32.totalorder %s16, 1
    %p97 = scmp.ne.s32.totalorder %s92, %s94
    %p98 = scmp.eq.s32.totalorder %s16, 0
    %p99 = por %p97, %p98
    %p100 = scmp.ne.s32.totalorder %s92, %s94
    %p101 = scmp.eq.s32.totalorder %s21, 1
    %p102 = por %p100, %p101
    %p103 = scmp.ne.s32.totalorder %s94, %s95
    %p104 = scmp.eq.s32.totalorder %s21, 0
    %p105 = por %p103, %p104
    %p106 = scmp.ne.s32.totalorder %s94, %s95
    %p107 = scmp.eq.s32.totalorder %s22, 1
    %p108 = por %p106, %p107
    %p110 = scmp.ne.s32.totalorder %s95, %s109
    %p111 = scmp.eq.s32.totalorder %s22, 0
    %p112 = por %p110, %p111
    %s114 = sadd.s32 %s113, 1
    %p117 = scmp.eq.s32.totalorder %s16, 1
    %p118 = scmp.ne.s32.totalorder %s113, %s115
    %p119 = scmp.eq.s32.totalorder %s16, 0
    %p120 = por %p118, %p119
    %p121 = scmp.ne.s32.totalorder %s113, %s115
    %p122 = scmp.eq.s32.totalorder %s21, 1
    %p123 = por %p121, %p122
    %p124 = scmp.ne.s32.totalorder %s115, %s116
    %p125 = scmp.eq.s32.totalorder %s21, 0
    %p126 = por %p124, %p125
    %p127 = scmp.ne.s32.totalorder %s115, %s116
    %p128 = scmp.eq.s32.totalorder %s22, 1
    %p129 = por %p127, %p128
    %p131 = scmp.ne.s32.totalorder %s116, %s130
    %p132 = scmp.eq.s32.totalorder %s22, 0
    %p133 = por %p131, %p132
    %s135 = sadd.s32 %s134, 1
    %p138 = scmp.eq.s32.totalorder %s16, 1
    %p139 = scmp.ne.s32.totalorder %s134, %s136
    %p140 = scmp.eq.s32.totalorder %s16, 0
    %p141 = por %p139, %p140
    %p142 = scmp.ne.s32.totalorder %s134, %s136
    %p143 = scmp.eq.s32.totalorder %s21, 1
    %p144 = por %p142, %p143
    %p145 = scmp.ne.s32.totalorder %s136, %s137
    %p146 = scmp.eq.s32.totalorder %s21, 0
    %p147 = por %p145, %p146
    %p148 = scmp.ne.s32.totalorder %s136, %s137
    %p149 = scmp.eq.s32.totalorder %s22, 1
    %p150 = por %p148, %p149
    %p152 = scmp.ne.s32.totalorder %s137, %s151
    %p153 = scmp.eq.s32.totalorder %s22, 0
    %p154 = por %p152, %p153
    %s156 = sadd.s32 %s155, 1
    %p159 = scmp.eq.s32.totalorder %s16, 1
    %p160 = scmp.ne.s32.totalorder %s155, %s157
    %p161 = scmp.eq.s32.totalorder %s16, 0
    %p162 = por %p160, %p161
    %p163 = scmp.ne.s32.totalorder %s155, %s157
    %p164 = scmp.eq.s32.totalorder %s21, 1
    %p165 = por %p163, %p164
    %p166 = scmp.ne.s32.totalorder %s157, %s158
    %p167 = scmp.eq.s32.totalorder %s21, 0
    %p168 = por %p166, %p167
    %p169 = scmp.ne.s32.totalorder %s157, %s158
    %p170 = scmp.eq.s32.totalorder %s22, 1
    %p171 = por %p169, %p170
    %p173 = scmp.ne.s32.totalorder %s158, %s172
    %p174 = scmp.eq.s32.totalorder %s22, 0
    %p175 = por %p173, %p174
    %s177 = sadd.s32 %s176, 1
    %p180 = scmp.eq.s32.totalorder %s16, 1
    %p181 = scmp.ne.s32.totalorder %s176, %s178
    %p182 = scmp.eq.s32.totalorder %s16, 0
    %p183 = por %p181, %p182
    %p184 = scmp.ne.s32.totalorder %s176, %s178
    %p185 = scmp.eq.s32.totalorder %s21, 1
    %p186 = por %p184, %p185
    %p187 = scmp.ne.s32.totalorder %s178, %s179
    %p188 = scmp.eq.s32.totalorder %s21, 0
    %p189 = por %p187, %p188
    %p190 = scmp.ne.s32.totalorder %s178, %s179
    %p191 = scmp.eq.s32.totalorder %s22, 1
    %p192 = por %p190, %p191
    %p194 = scmp.ne.s32.totalorder %s179, %s193
    %p195 = scmp.eq.s32.totalorder %s22, 0
    %p196 = por %p194, %p195
    %s198 = sadd.s32 %s197, 1
    %p201 = scmp.eq.s32.totalorder %s16, 1
    %p202 = scmp.ne.s32.totalorder %s197, %s199
    %p203 = scmp.eq.s32.totalorder %s16, 0
    %p204 = por %p202, %p203
    %p205 = scmp.ne.s32.totalorder %s197, %s199
    %p206 = scmp.eq.s32.totalorder %s21, 1
    %p207 = por %p205, %p206
    %p208 = scmp.ne.s32.totalorder %s199, %s200
    %p209 = scmp.eq.s32.totalorder %s21, 0
    %p210 = por %p208, %p209
    %p211 = scmp.ne.s32.totalorder %s199, %s200
    %p212 = scmp.eq.s32.totalorder %s22, 1
    %p213 = por %p211, %p212
    %p215 = scmp.ne.s32.totalorder %s200, %s214
    %p216 = scmp.eq.s32.totalorder %s22, 0
    %p217 = por %p215, %p216
    %s219 = sadd.s32 %s218, 1
    %p222 = scmp.eq.s32.totalorder %s16, 1
    %p223 = scmp.ne.s32.totalorder %s218, %s220
    %p224 = scmp.eq.s32.totalorder %s16, 0
    %p225 = por %p223, %p224
    %p226 = scmp.ne.s32.totalorder %s218, %s220
    %p227 = scmp.eq.s32.totalorder %s21, 1
    %p228 = por %p226, %p227
    %p229 = scmp.ne.s32.totalorder %s220, %s221
    %p230 = scmp.eq.s32.totalorder %s21, 0
    %p231 = por %p229, %p230
    %p232 = scmp.ne.s32.totalorder %s220, %s221
    %p233 = scmp.eq.s32.totalorder %s22, 1
    %p234 = por %p232, %p233
    %p236 = scmp.ne.s32.totalorder %s221, %s235
    %p237 = scmp.eq.s32.totalorder %s22, 0
    %p238 = por %p236, %p237
    %s239 = ssub.s32 %s16, %s23
    %p240 = scmp.eq.s32.totalorder %s239, 0
    %s242 = sadd.s32 %s241, 1
    %s243 = scalar_select %p240, %s241, %s242
    %p246 = pneg %p240
    %p247 = scmp.eq.s32.totalorder %s16, 1
    %p248 = por %p246, %p247
    %p249 = scmp.ne.s32.totalorder %s241, %s244
    %p250 = scmp.eq.s32.totalorder %s16, 0
    %p251 = por %p249, %p250
    %p252 = scmp.ne.s32.totalorder %s241, %s244
    %p253 = scmp.eq.s32.totalorder %s21, 1
    %p254 = por %p252, %p253
    %p255 = scmp.ne.s32.totalorder %s244, %s245
    %p256 = scmp.eq.s32.totalorder %s21, 0
    %p257 = por %p255, %p256
    %p258 = scmp.ne.s32.totalorder %s244, %s245
    %p259 = scmp.eq.s32.totalorder %s22, 1
    %p260 = por %p258, %p259
    %p262 = scmp.ne.s32.totalorder %s245, %s261
    %p263 = scmp.eq.s32.totalorder %s22, 0
    %p264 = por %p262, %p263
    %p265 = scmp.le.s32.totalorder 1, %s16
    %p266 = scmp.lt.s32.totalorder %s16, 3
    %p267 = pnand %p265, %p266
    %p268 = pneg %p267
    // Predicated region
    $region9: #{basic_block_forward.1} parent=5 // pred_check
      _
    $region10: #{basic_block_forward.1} parent=5 // pred_check_branch
      %270 = sbr.rel (%p267) target = $region12
    $region11: #{basic_block_forward.1} parent=5 // pred_region
      %s271 = ssub.s32 %s16, 1
      // Predicated region
      $region13: #{basic_block_forward.1} parent=11 // pred_check
        %p272 = pneg %p63
      $region14: #{basic_block_forward.1} parent=11 // pred_check_branch
        %274 = sbr.rel (%p272) target = $region16
      $region15: #{basic_block_forward.1} parent=11 // pred_region
        _
      $region16: #{basic_block_forward.1} parent=11 // pred_fallthru
        _
      // Predicated region
      $region17: #{basic_block_forward.1} parent=11 // pred_check
        %p275 = pneg %p84
      $region18: #{basic_block_forward.1} parent=11 // pred_check_branch
        %277 = sbr.rel (%p275) target = $region20
      $region19: #{basic_block_forward.1} parent=11 // pred_region
        _
      $region20: #{basic_block_forward.1} parent=11 // pred_fallthru
        _
      // Predicated region
      $region21: #{basic_block_forward.1} parent=11 // pred_check
        %p278 = pneg %p105
      $region22: #{basic_block_forward.1} parent=11 // pred_check_branch
        %280 = sbr.rel (%p278) target = $region24
      $region23: #{basic_block_forward.1} parent=11 // pred_region
        _
      $region24: #{basic_block_forward.1} parent=11 // pred_fallthru
        _
      // Predicated region
      $region25: #{basic_block_forward.1} parent=11 // pred_check
        %p281 = pneg %p126
      $region26: #{basic_block_forward.1} parent=11 // pred_check_branch
        %283 = sbr.rel (%p281) target = $region28
      $region27: #{basic_block_forward.1} parent=11 // pred_region
        _
      $region28: #{basic_block_forward.1} parent=11 // pred_fallthru
        _
      // Predicated region
      $region29: #{basic_block_forward.1} parent=11 // pred_check
        %p284 = pneg %p147
      $region30: #{basic_block_forward.1} parent=11 // pred_check_branch
        %286 = sbr.rel (%p284) target = $region32
      $region31: #{basic_block_forward.1} parent=11 // pred_region
        _
      $region32: #{basic_block_forward.1} parent=11 // pred_fallthru
        _
      // Predicated region
      $region33: #{basic_block_forward.1} parent=11 // pred_check
        %p287 = pneg %p168
      $region34: #{basic_block_forward.1} parent=11 // pred_check_branch
        %289 = sbr.rel (%p287) target = $region36
      $region35: #{basic_block_forward.1} parent=11 // pred_region
        _
      $region36: #{basic_block_forward.1} parent=11 // pred_fallthru
        _
      // Predicated region
      $region37: #{basic_block_forward.1} parent=11 // pred_check
        %p290 = pneg %p189
      $region38: #{basic_block_forward.1} parent=11 // pred_check_branch
        %292 = sbr.rel (%p290) target = $region40
      $region39: #{basic_block_forward.1} parent=11 // pred_region
        _
      $region40: #{basic_block_forward.1} parent=11 // pred_fallthru
        _
      // Predicated region
      $region41: #{basic_block_forward.1} parent=11 // pred_check
        %p293 = pneg %p210
      $region42: #{basic_block_forward.1} parent=11 // pred_check_branch
        %295 = sbr.rel (%p293) target = $region44
      $region43: #{basic_block_forward.1} parent=11 // pred_region
        _
      $region44: #{basic_block_forward.1} parent=11 // pred_fallthru
        _
      // Predicated region
      $region45: #{basic_block_forward.1} parent=11 // pred_check
        %p296 = pneg %p231
      $region46: #{basic_block_forward.1} parent=11 // pred_check_branch
        %298 = sbr.rel (%p296) target = $region48
      $region47: #{basic_block_forward.1} parent=11 // pred_region
        _
      $region48: #{basic_block_forward.1} parent=11 // pred_fallthru
        _
    $region12: #{basic_block_forward.1} parent=5 // pred_fallthru
      _
    %p299 = scmp.lt.s32.totalorder %s16, 2
    // Predicated region
    $region49: #{basic_block_forward.1} parent=5 // pred_check
      %p300 = pneg %p299
    $region50: #{basic_block_forward.1} parent=5 // pred_check_branch
      %302 = sbr.rel (%p300) target = $region52
    $region51: #{basic_block_forward.1} parent=5 // pred_region
      // Predicated region
      $region53: #{basic_block_forward.1} parent=51 // pred_check
        %p303 = pneg %p36
      $region54: #{basic_block_forward.1} parent=51 // pred_check_branch
        %305 = sbr.rel (%p303) target = $region56
      $region55: #{basic_block_forward.1} parent=51 // pred_region
        %p306 = scmp.lt.s32.totalorder %s16, 1
        %s307 = scalar_select %p306, %s16, 1
        %s308 = smul.addr %s307, 18
        %s309 = smul.addr %s308, 4
        %s310 = scalar_lea.vmem %s0, %s309
      $region56: #{basic_block_forward.1} parent=51 // pred_fallthru
        _
    $region52: #{basic_block_forward.1} parent=5 // pred_fallthru
      _
    %p311 = scmp.le.s32.totalorder 1, %s16
    %p312 = scmp.lt.s32.totalorder %s16, 3
    %p313 = pnand %p311, %p312
    %p314 = pneg %p313
    // Predicated region
    $region57: #{basic_block_forward.1} parent=5 // pred_check
      _
    $region58: #{basic_block_forward.1} parent=5 // pred_check_branch
      %316 = sbr.rel (%p313) target = $region60
    $region59: #{basic_block_forward.1} parent=5 // pred_region
      %s317 = ssub.s32 %s16, 1
      %p318 = scmp.lt.s32.totalorder %s21, 1
      %s319 = scalar_select %p318, %s21, 1
      %s320 = smul.addr %s319, 18
      %s321 = smul.addr %s320, 4
      %s322 = scalar_lea.vmem %s0, %s321
      %p323 = pneg %p42
      %p324 = pneg %p39
      %p325 = pneg %p63
      %p326 = pneg %p60
      %p327 = pneg %p84
      %p328 = pneg %p81
      %p329 = pneg %p105
      %p330 = pneg %p102
      %p331 = pneg %p126
      %p332 = pneg %p123
      %p333 = pneg %p147
      %p334 = pneg %p144
      %p335 = pneg %p168
      %p336 = pneg %p165
      %p337 = pneg %p189
      %p338 = pneg %p186
      %p339 = pneg %p210
      %p340 = pneg %p207
      %p341 = pneg %p231
      %p342 = pneg %p228
      %p343 = pneg %p257
      %p344 = pneg %p254
      %p345 = scmp.lt.s32.totalorder %s21, 1
      %s346 = scalar_select %p345, %s21, 1
      %s347 = smul.addr %s346, 8
      %s348 = smul.addr %s347, 8
      %s349 = scalar_lea.vmem %s10, %s348
      %p350 = scmp.lt.s32.totalorder %s21, 1
      %s351 = scalar_select %p350, %s21, 1
      %s352 = smul.addr %s351, 18
      %s353 = smul.addr %s352, 4
      %s354 = scalar_lea.vmem %s0, %s353
      %p355 = scmp.lt.s32.totalorder %s21, 1
      %s356 = scalar_select %p355, %s21, 1
      %s357 = smul.addr %s356, 8
      %s358 = smul.addr %s357, 8
      %s359 = scalar_lea.vmem %s10, %s358
      %v361 = vld [vmem:[%s4] sm:$0x1]
      %v362 = vld [vmem:[%s5] sm:$0x1]
      %v363 = vld [vmem:[%s6] sm:$0x1]
      %v364 = vld [vmem:[%s7] sm:$0x1]
      %365 = vst [vmem:[#allocation2] sm:$0xf] 0
      %366 = vst [vmem:[#allocation2 + $0x4] sm:$0x1] 0
      %s367 = scalar_lea.vmem [#allocation2], 72
      %368 = vst [vmem:[%s367] sm:$0xf] 0
      %369 = vst [vmem:[%s367 + $0x4] sm:$0x1] 0
      %vm370 = vcmask 1040384
      %vm371 = vsmask.f32 256
      %vm372 = vmand %vm370, %vm371
      %v373 = vld [vmem:[#allocation2] sm:$0x1]
      %v374 = vsel %vm372, 0, %v373
      %375 = vst [vmem:[#allocation2] sm:$0x1] %v374
      %v376 = vld [vmem:[#allocation2 + $0x8] sm:$0x1]
      %v377 = vsel %vm372, 0, %v376
      %378 = vst [vmem:[#allocation2 + $0x8] sm:$0x1] %v377
      %v379 = vld [vmem:[#allocation2 + $0x10] sm:$0x1]
      %v380 = vsel %vm372, 0, %v379
      %381 = vst [vmem:[#allocation2 + $0x10] sm:$0x1] %v380
      %v382 = vld [vmem:[#allocation2 + $0x18] sm:$0x1]
      %v383 = vsel %vm372, 0, %v382
      %384 = vst [vmem:[#allocation2 + $0x18] sm:$0x1] %v383
      %v385 = vld [vmem:[#allocation2 + $0x20] sm:$0x1]
      %v386 = vsel %vm372, 0, %v385
      %387 = vst [vmem:[#allocation2 + $0x20] sm:$0x1] %v386
      %v388 = vld [vmem:[#allocation2 + $0x28] sm:$0x1]
      %v389 = vsel %vm372, 0, %v388
      %390 = vst [vmem:[#allocation2 + $0x28] sm:$0x1] %v389
      %v391 = vld [vmem:[#allocation2 + $0x30] sm:$0x1]
      %v392 = vsel %vm372, 0, %v391
      %393 = vst [vmem:[#allocation2 + $0x30] sm:$0x1] %v392
      %v394 = vld [vmem:[#allocation2 + $0x38] sm:$0x1]
      %v395 = vsel %vm372, 0, %v394
      %396 = vst [vmem:[#allocation2 + $0x38] sm:$0x1] %v395
      %v397 = vld [vmem:[#allocation2 + $0x40] sm:$0x1]
      %v398 = vsel %vm372, 0, %v397
      %399 = vst [vmem:[#allocation2 + $0x40] sm:$0x1] %v398
      %v400 = vld [vmem:[#allocation2 + $0x48] sm:$0x1]
      %v401 = vsel %vm372, 0, %v400
      %402 = vst [vmem:[#allocation2 + $0x48] sm:$0x1] %v401
      %vm403 = vsmask.f32 7938
      %vm404 = vmand %vm370, %vm403
      %v405 = vld [vmem:[#allocation2 + $0x4] sm:$0x1]
      %v406 = vsel %vm404, 0, %v405
      %407 = vst [vmem:[#allocation2 + $0x4] sm:$0x1] %v406
      %v408 = vld [vmem:[#allocation2 + $0xc] sm:$0x1]
      %v409 = vsel %vm404, 0, %v408
      %410 = vst [vmem:[#allocation2 + $0xc] sm:$0x1] %v409
      %v411 = vld [vmem:[#allocation2 + $0x14] sm:$0x1]
      %v412 = vsel %vm404, 0, %v411
      %413 = vst [vmem:[#allocation2 + $0x14] sm:$0x1] %v412
      %v414 = vld [vmem:[#allocation2 + $0x1c] sm:$0x1]
      %v415 = vsel %vm404, 0, %v414
      %416 = vst [vmem:[#allocation2 + $0x1c] sm:$0x1] %v415
      %v417 = vld [vmem:[#allocation2 + $0x24] sm:$0x1]
      %v418 = vsel %vm404, 0, %v417
      %419 = vst [vmem:[#allocation2 + $0x24] sm:$0x1] %v418
      %v420 = vld [vmem:[#allocation2 + $0x2c] sm:$0x1]
      %v421 = vsel %vm404, 0, %v420
      %422 = vst [vmem:[#allocation2 + $0x2c] sm:$0x1] %v421
      %v423 = vld [vmem:[#allocation2 + $0x34] sm:$0x1]
      %v424 = vsel %vm404, 0, %v423
      %425 = vst [vmem:[#allocation2 + $0x34] sm:$0x1] %v424
      %v426 = vld [vmem:[#allocation2 + $0x3c] sm:$0x1]
      %v427 = vsel %vm404, 0, %v426
      %428 = vst [vmem:[#allocation2 + $0x3c] sm:$0x1] %v427
      %v429 = vld [vmem:[#allocation2 + $0x44] sm:$0x1]
      %v430 = vsel %vm404, 0, %v429
      %431 = vst [vmem:[#allocation2 + $0x44] sm:$0x1] %v430
      %v432 = vld [vmem:[#allocation2 + $0x4c] sm:$0x1]
      %v433 = vsel %vm404, 0, %v432
      %434 = vst [vmem:[#allocation2 + $0x4c] sm:$0x1] %v433
      %v435 = vld [vmem:[%s354] sm:$0xf]
      %v436 = vld [vmem:[%s354 + $0x8] sm:$0xf]
      %v437 = vld [vmem:[%s354 + $0x10] sm:$0xf]
      %v438 = vld [vmem:[%s354 + $0x18] sm:$0xf]
      %v439 = vld [vmem:[%s354 + $0x20] sm:$0xf]
      %v440 = vld [vmem:[%s354 + $0x28] sm:$0xf]
      %v441 = vld [vmem:[%s354 + $0x30] sm:$0xf]
      %v442 = vld [vmem:[%s354 + $0x38] sm:$0xf]
      %v443 = vld [vmem:[%s1] sm:$0xf]
      %v444 = vld [vmem:[%s1 + $0x4] sm:$0xf]
      %v445 = vld [vmem:[%s354 + $0x4] sm:$0x1]
      %v446 = vld [vmem:[%s354 + $0xc] sm:$0x1]
      %v447 = vld [vmem:[%s354 + $0x14] sm:$0x1]
      %v448 = vld [vmem:[%s354 + $0x1c] sm:$0x1]
      %v449 = vld [vmem:[%s354 + $0x24] sm:$0x1]
      %v450 = vld [vmem:[%s354 + $0x2c] sm:$0x1]
      %v451 = vld [vmem:[%s354 + $0x34] sm:$0x1]
      %v452 = vld [vmem:[%s354 + $0x3c] sm:$0x1]
      %vm453 = vsmask.f32 3328
      %vm454 = vsmask.f32 7440
      %vm455 = vmor %vm453, %vm454
      %v457 = vshrl.u32 %v435, 16
      %v459 = vrot.slane %v457, 4
      %v460 = vshll.u32 %v435, 16
      %v462 = vrot.slane %v460, 5
      %v463 = vor.u32 %v459, %v462
      %v464 = vrot.slane %v463, 4
      %v466 = vshll.u32 %v445, 16
      %v468 = vrot.slane %v466, 5
      %v469 = vsel %vm455, %v464, %v468
      %v471 = vshrl.u32 %v436, 16
      %v473 = vrot.slane %v471, 4
      %v474 = vshll.u32 %v436, 16
      %v476 = vrot.slane %v474, 5
      %v477 = vor.u32 %v473, %v476
      %v478 = vrot.slane %v477, 4
      %v480 = vshll.u32 %v446, 16
      %v482 = vrot.slane %v480, 5
      %v483 = vsel %vm455, %v478, %v482
      %v485 = vshrl.u32 %v437, 16
      %v487 = vrot.slane %v485, 4
      %v488 = vshll.u32 %v437, 16
      %v490 = vrot.slane %v488, 5
      %v491 = vor.u32 %v487, %v490
      %v492 = vrot.slane %v491, 4
      %v494 = vshll.u32 %v447, 16
      %v496 = vrot.slane %v494, 5
      %v497 = vsel %vm455, %v492, %v496
      %v499 = vshrl.u32 %v438, 16
      %v501 = vrot.slane %v499, 4
      %v502 = vshll.u32 %v438, 16
      %v504 = vrot.slane %v502, 5
      %v505 = vor.u32 %v501, %v504
      %v506 = vrot.slane %v505, 4
      %v508 = vshll.u32 %v448, 16
      %v510 = vrot.slane %v508, 5
      %v511 = vsel %vm455, %v506, %v510
      %v513 = vshrl.u32 %v439, 16
      %v515 = vrot.slane %v513, 4
      %v516 = vshll.u32 %v439, 16
      %v518 = vrot.slane %v516, 5
      %v519 = vor.u32 %v515, %v518
      %v520 = vrot.slane %v519, 4
      %v522 = vshll.u32 %v449, 16
      %v524 = vrot.slane %v522, 5
      %v525 = vsel %vm455, %v520, %v524
      %v527 = vshrl.u32 %v440, 16
      %v529 = vrot.slane %v527, 4
      %v530 = vshll.u32 %v440, 16
      %v532 = vrot.slane %v530, 5
      %v533 = vor.u32 %v529, %v532
      %v534 = vrot.slane %v533, 4
      %v536 = vshll.u32 %v450, 16
      %v538 = vrot.slane %v536, 5
      %v539 = vsel %vm455, %v534, %v538
      %v541 = vshrl.u32 %v441, 16
      %v543 = vrot.slane %v541, 4
      %v544 = vshll.u32 %v441, 16
      %v546 = vrot.slane %v544, 5
      %v547 = vor.u32 %v543, %v546
      %v548 = vrot.slane %v547, 4
      %v550 = vshll.u32 %v451, 16
      %v552 = vrot.slane %v550, 5
      %v553 = vsel %vm455, %v548, %v552
      %v555 = vshrl.u32 %v442, 16
      %v557 = vrot.slane %v555, 4
      %v558 = vshll.u32 %v442, 16
      %v560 = vrot.slane %v558, 5
      %v561 = vor.u32 %v557, %v560
      %v562 = vrot.slane %v561, 4
      %v564 = vshll.u32 %v452, 16
      %v566 = vrot.slane %v564, 5
      %v567 = vsel %vm455, %v562, %v566
      %v568 = vld [vmem:[%s1 + $0x8] sm:$0xf]
      %v569 = vld [vmem:[%s1 + $0xc] sm:$0xf]
      %v570 = vunpack.c.l.b16 %v469
      %v571 = vunpack.c.l.b16 %v483
      %v572 = vunpack.c.l.b16 %v497
      %v573 = vunpack.c.l.b16 %v511
      %v574 = vunpack.c.l.b16 %v525
      %v575 = vunpack.c.l.b16 %v539
      %v576 = vunpack.c.l.b16 %v553
      %v577 = vunpack.c.l.b16 %v567
      %v578 = vpack.c.b16 %v571, %v570
      %v579 = vpack.c.b16 %v573, %v572
      %v580 = vpack.c.b16 %v575, %v574
      %v581 = vpack.c.b16 %v577, %v576
      %v584 = vunpack.c.l.b16 %v568
      %v585 = vunpack.c.l.b16 %v569
      %v586 = vpack.c.b16 %v585, %v584
      %vm588 = vcmask 130048
      %v590 = vsel %vm588, %v578, 0
      %v593 = vsel %vm588, %v579, 0
      %v596 = vsel %vm588, %v580, 0
      %v599 = vsel %vm588, %v581, 0
      %601 = vmatprep.subr.bf16.mxu0 0
      %602 = vmatpush1.bf16.msra.mxu0 %v586
      %603 = vmatprep.subr.bf16.mxu0 0
      %604 = vmatpush1.bf16.msra.mxu0 0
      %605 = vmatprep.subr.bf16.mxu0 0
      %606 = vmatpush1.bf16.msra.mxu0 0
      %607 = vmatprep.subr.bf16.mxu0 0
      %608 = vmatpush1.bf16.msra.mxu0 0
      %609 = vmatprep.subr.bf16.mxu0 0
      %610 = vmatpush1.bf16.msra.mxu0 0
      %611 = vmatprep.subr.bf16.mxu0 0
      %612 = vmatpush1.bf16.msra.mxu0 0
      %613 = vmatprep.subr.bf16.mxu0 0
      %614 = vmatpush1.bf16.msra.mxu0 0
      %615 = vmatprep.subr.bf16.mxu0 0
      %616 = vmatpush1.bf16.msra.mxu0 0
      %617 = vmatprep.subr.bf16.mxu0 0
      %618 = vmatpush1.bf16.msra.mxu0 0
      %619 = vmatprep.subr.bf16.mxu0 0
      %620 = vmatpush1.bf16.msra.mxu0 0
      %621 = vmatprep.subr.bf16.mxu0 0
      %622 = vmatpush1.bf16.msra.mxu0 0
      %623 = vmatprep.subr.bf16.mxu0 0
      %624 = vmatpush1.bf16.msra.mxu0 0
      %625 = vmatprep.subr.bf16.mxu0 0
      %626 = vmatpush1.bf16.msra.mxu0 0
      %627 = vmatprep.subr.bf16.mxu0 0
      %628 = vmatpush1.bf16.msra.mxu0 0
      %629 = vmatprep.subr.bf16.mxu0 0
      %630 = vmatpush1.bf16.msra.mxu0 0
      %631 = vmatprep.subr.bf16.mxu0 0
      %632 = vmatpush1.bf16.msra.mxu0 0
      %633 = vmatprep.mubr.bf16.mxu0 0
      %634 = vmatmul.mubr.bf16.gmra.mrb[0].mxu0 %v590
      %v635 = vpop.f32.mrb[0].mxu0
      %v636 = vadd.f32 0.0, %v635
      %v637 = vpop.f32.mrb[0].mxu0
      %v638 = vpop.f32.mrb[0].mxu0
      %v639 = vadd.f32 0.0, %v638
      %v640 = vpop.f32.mrb[0].mxu0
      %641 = vmatprep.mubr.bf16.mxu0 0
      %642 = vmatmul.mubr.bf16.gmra.mrb[0].mxu0 %v593
      %v643 = vpop.f32.mrb[0].mxu0
      %v644 = vadd.f32 0.0, %v643
      %v645 = vpop.f32.mrb[0].mxu0
      %v646 = vpop.f32.mrb[0].mxu0
      %v647 = vadd.f32 0.0, %v646
      %v648 = vpop.f32.mrb[0].mxu0
      %649 = vmatprep.mubr.bf16.mxu0 0
      %650 = vmatmul.mubr.bf16.gmra.mrb[0].mxu0 %v596
      %v651 = vpop.f32.mrb[0].mxu0
      %v652 = vadd.f32 0.0, %v651
      %v653 = vpop.f32.mrb[0].mxu0
      %v654 = vpop.f32.mrb[0].mxu0
      %v655 = vadd.f32 0.0, %v654
      %v656 = vpop.f32.mrb[0].mxu0
      %657 = vmatprep.mubr.bf16.mxu0 0
      %658 = vmatmul.mubr.bf16.gmra.mrb[0].mxu0 %v599
      %v659 = vpop.f32.mrb[0].mxu0
      %v660 = vadd.f32 0.0, %v659
      %v661 = vpop.f32.mrb[0].mxu0
      %v662 = vpop.f32.mrb[0].mxu0
      %v663 = vadd.f32 0.0, %v662
      %v664 = vpop.f32.mrb[0].mxu0
      %665 = vdwg.mxu0
      %v674 = vunpack.c.l.b16 %v435
      %v675 = vunpack.c.l.b16 %v436
      %v676 = vunpack.c.l.b16 %v437
      %v677 = vunpack.c.l.b16 %v438
      %v678 = vunpack.c.l.b16 %v439
      %v679 = vunpack.c.l.b16 %v440
      %v680 = vunpack.c.l.b16 %v441
      %v681 = vunpack.c.l.b16 %v442
      %v682 = vpack.c.b16 %v675, %v674
      %v683 = vpack.c.b16 %v677, %v676
      %v684 = vpack.c.b16 %v679, %v678
      %v685 = vpack.c.b16 %v681, %v680
      %v688 = vunpack.c.l.b16 %v443
      %v689 = vunpack.c.l.b16 %v444
      %v690 = vpack.c.b16 %v689, %v688
      %v693 = vsel %vm588, %v682, 0
      %v696 = vsel %vm588, %v683, 0
      %v699 = vsel %vm588, %v684, 0
      %v702 = vsel %vm588, %v685, 0
      %704 = vmatprep.subr.bf16.mxu0 0
      %705 = vmatpush1.bf16.msra.mxu0 %v690
      %706 = vmatprep.subr.bf16.mxu0 0
      %707 = vmatpush1.bf16.msra.mxu0 0
      %708 = vmatprep.subr.bf16.mxu0 0
      %709 = vmatpush1.bf16.msra.mxu0 0
      %710 = vmatprep.subr.bf16.mxu0 0
      %711 = vmatpush1.bf16.msra.mxu0 0
      %712 = vmatprep.subr.bf16.mxu0 0
      %713 = vmatpush1.bf16.msra.mxu0 0
      %714 = vmatprep.subr.bf16.mxu0 0
      %715 = vmatpush1.bf16.msra.mxu0 0
      %716 = vmatprep.subr.bf16.mxu0 0
      %717 = vmatpush1.bf16.msra.mxu0 0
      %718 = vmatprep.subr.bf16.mxu0 0
      %719 = vmatpush1.bf16.msra.mxu0 0
      %720 = vmatprep.subr.bf16.mxu0 0
      %721 = vmatpush1.bf16.msra.mxu0 0
      %722 = vmatprep.subr.bf16.mxu0 0
      %723 = vmatpush1.bf16.msra.mxu0 0
      %724 = vmatprep.subr.bf16.mxu0 0
      %725 = vmatpush1.bf16.msra.mxu0 0
      %726 = vmatprep.subr.bf16.mxu0 0
      %727 = vmatpush1.bf16.msra.mxu0 0
      %728 = vmatprep.subr.bf16.mxu0 0
      %729 = vmatpush1.bf16.msra.mxu0 0
      %730 = vmatprep.subr.bf16.mxu0 0
      %731 = vmatpush1.bf16.msra.mxu0 0
      %732 = vmatprep.subr.bf16.mxu0 0
      %733 = vmatpush1.bf16.msra.mxu0 0
      %734 = vmatprep.subr.bf16.mxu0 0
      %735 = vmatpush1.bf16.msra.mxu0 0
      %736 = vmatprep.mubr.bf16.mxu0 0
      %737 = vmatmul.mubr.bf16.gmra.mrb[0].mxu0 %v693
      %v738 = vpop.f32.mrb[0].mxu0
      %v739 = vadd.f32 %v636, %v738
      %v740 = vpop.f32.mrb[0].mxu0
      %v741 = vpop.f32.mrb[0].mxu0
      %v742 = vadd.f32 %v639, %v741
      %v743 = vpop.f32.mrb[0].mxu0
      %744 = vmatprep.mubr.bf16.mxu0 0
      %745 = vmatmul.mubr.bf16.gmra.mrb[0].mxu0 %v696
      %v746 = vpop.f32.mrb[0].mxu0
      %v747 = vadd.f32 %v644, %v746
      %v748 = vpop.f32.mrb[0].mxu0
      %v749 = vpop.f32.mrb[0].mxu0
      %v750 = vadd.f32 %v647, %v749
      %v751 = vpop.f32.mrb[0].mxu0
      %752 = vmatprep.mubr.bf16.mxu0 0
      %753 = vmatmul.mubr.bf16.gmra.mrb[0].mxu0 %v699
      %v754 = vpop.f32.mrb[0].mxu0
      %v755 = vadd.f32 %v652, %v754
      %v756 = vpop.f32.mrb[0].mxu0
      %v757 = vpop.f32.mrb[0].mxu0
      %v758 = vadd.f32 %v655, %v757
      %v759 = vpop.f32.mrb[0].mxu0
      %760 = vmatprep.mubr.bf16.mxu0 0
      %761 = vmatmul.mubr.bf16.gmra.mrb[0].mxu0 %v702
      %v762 = vpop.f32.mrb[0].mxu0
      %v763 = vadd.f32 %v660, %v762
      %v764 = vpop.f32.mrb[0].mxu0
      %v765 = vpop.f32.mrb[0].mxu0
      %v766 = vadd.f32 %v663, %v765
      %v767 = vpop.f32.mrb[0].mxu0
      %768 = vdwg.mxu0
      %s769 = scalar_lea.vmem %s354, 8
      %v770 = vld [vmem:[%s769] sm:$0xf]
      %v771 = vld [vmem:[%s769 + $0x8] sm:$0xf]
      %v772 = vld [vmem:[%s769 + $0x10] sm:$0xf]
      %v773 = vld [vmem:[%s769 + $0x18] sm:$0xf]
      %v774 = vld [vmem:[%s769 + $0x20] sm:$0xf]
      %v775 = vld [vmem:[%s769 + $0x28] sm:$0xf]
      %v776 = vld [vmem:[%s769 + $0x30] sm:$0xf]
      %v777 = vld [vmem:[%s769 + $0x38] sm:$0xf]
      %s778 = scalar_lea.vmem %s1, 16
      %v779 = vld [vmem:[%s778] sm:$0xf]
      %v780 = vld [vmem:[%s778 + $0x4] sm:$0xf]
      %v789 = vunpack.c.l.b16 %v770
      %v790 = vunpack.c.l.b16 %v771
      %v791 = vunpack.c.l.b16 %v772
      %v792 = vunpack.c.l.b16 %v773
      %v793 = vunpack.c.l.b16 %v774
      %v794 = vunpack.c.l.b16 %v775
      %v795 = vunpack.c.l.b16 %v776
      %v796 = vunpack.c.l.b16 %v777
      %v797 = vpack.c.b16 %v790, %v789
      %v798 = vpack.c.b16 %v792, %v791
      %v799 = vpack.c.b16 %v794, %v793
      %v800 = vpack.c.b16 %v796, %v795
      %v803 = vunpack.c.l.b16 %v779
      %v804 = vunpack.c.l.b16 %v780
      %v805 = vpack.c.b16 %v804, %v803
      %v808 = vsel %vm588, %v797, 0
      %v811 = vsel %vm588, %v798, 0
      %v814 = vsel %vm588, %v799, 0
      %v817 = vsel %vm588, %v800, 0
      %819 = vmatprep.subr.bf16.mxu0 0
      %820 = vmatpush1.bf16.msra.mxu0 %v805
      %821 = vmatprep.subr.bf16.mxu0 0
      %822 = vmatpush1.bf16.msra.mxu0 0
      %823 = vmatprep.subr.bf16.mxu0 0
      %824 = vmatpush1.bf16.msra.mxu0 0
      %825 = vmatprep.subr.bf16.mxu0 0
      %826 = vmatpush1.bf16.msra.mxu0 0
      %827 = vmatprep.subr.bf16.mxu0 0
      %828 = vmatpush1.bf16.msra.mxu0 0
      %829 = vmatprep.subr.bf16.mxu0 0
      %830 = vmatpush1.bf16.msra.mxu0 0
      %831 = vmatprep.subr.bf16.mxu0 0
      %832 = vmatpush1.bf16.msra.mxu0 0
      %833 = vmatprep.subr.bf16.mxu0 0
      %834 = vmatpush1.bf16.msra.mxu0 0
      %835 = vmatprep.subr.bf16.mxu0 0
      %836 = vmatpush1.bf16.msra.mxu0 0
      %837 = vmatprep.subr.bf16.mxu0 0
      %838 = vmatpush1.bf16.msra.mxu0 0
      %839 = vmatprep.subr.bf16.mxu0 0
      %840 = vmatpush1.bf16.msra.mxu0 0
      %841 = vmatprep.subr.bf16.mxu0 0
      %842 = vmatpush1.bf16.msra.mxu0 0
      %843 = vmatprep.subr.bf16.mxu0 0
      %844 = vmatpush1.bf16.msra.mxu0 0
      %845 = vmatprep.subr.bf16.mxu0 0
      %846 = vmatpush1.bf16.msra.mxu0 0
      %847 = vmatprep.subr.bf16.mxu0 0
      %848 = vmatpush1.bf16.msra.mxu0 0
      %849 = vmatprep.subr.bf16.mxu0 0
      %850 = vmatpush1.bf16.msra.mxu0 0
      %851 = vmatprep.mubr.bf16.mxu0 0
      %852 = vmatmul.mubr.bf16.gmra.mrb[0].mxu0 %v808
      %v853 = vpop.f32.mrb[0].mxu0
      %v854 = vadd.f32 0.0, %v853
      %v855 = vpop.f32.mrb[0].mxu0
      %v856 = vpop.f32.mrb[0].mxu0
      %v857 = vadd.f32 0.0, %v856
      %v858 = vpop.f32.mrb[0].mxu0
      %859 = vmatprep.mubr.bf16.mxu0 0
      %860 = vmatmul.mubr.bf16.gmra.mrb[0].mxu0 %v811
      %v861 = vpop.f32.mrb[0].mxu0
      %v862 = vadd.f32 0.0, %v861
      %v863 = vpop.f32.mrb[0].mxu0
      %v864 = vpop.f32.mrb[0].mxu0
      %v865 = vadd.f32 0.0, %v864
      %v866 = vpop.f32.mrb[0].mxu0
      %867 = vmatprep.mubr.bf16.mxu0 0
      %868 = vmatmul.mubr.bf16.gmra.mrb[0].mxu0 %v814
      %v869 = vpop.f32.mrb[0].mxu0
      %v870 = vadd.f32 0.0, %v869
      %v871 = vpop.f32.mrb[0].mxu0
      %v872 = vpop.f32.mrb[0].mxu0
      %v873 = vadd.f32 0.0, %v872
      %v874 = vpop.f32.mrb[0].mxu0
      %875 = vmatprep.mubr.bf16.mxu0 0
      %876 = vmatmul.mubr.bf16.gmra.mrb[0].mxu0 %v817
      %v877 = vpop.f32.mrb[0].mxu0
      %v878 = vadd.f32 0.0, %v877
      %v879 = vpop.f32.mrb[0].mxu0
      %v880 = vpop.f32.mrb[0].mxu0
      %v881 = vadd.f32 0.0, %v880
      %v882 = vpop.f32.mrb[0].mxu0
      %883 = vdwg.mxu0
      %v884 = vadd.f32 %v739, %v854
      %v885 = vadd.f32 %v742, %v857
      %v886 = vadd.f32 %v747, %v862
      %v887 = vadd.f32 %v750, %v865
      %v888 = vadd.f32 %v755, %v870
      %v889 = vadd.f32 %v758, %v873
      %v890 = vadd.f32 %v763, %v878
      %v891 = vadd.f32 %v766, %v881
      %v892 = vld [vmem:[%s769] sm:$0xf]
      %v893 = vld [vmem:[%s769 + $0x4] sm:$0x1]
      %v894 = vld [vmem:[%s769 + $0x8] sm:$0xf]
      %v895 = vld [vmem:[%s769 + $0xc] sm:$0x1]
      %v896 = vld [vmem:[%s769 + $0x10] sm:$0xf]
      %v897 = vld [vmem:[%s769 + $0x14] sm:$0x1]
      %v898 = vld [vmem:[%s769 + $0x18] sm:$0xf]
      %v899 = vld [vmem:[%s769 + $0x1c] sm:$0x1]
      %v900 = vld [vmem:[%s769 + $0x20] sm:$0xf]
      %v901 = vld [vmem:[%s769 + $0x24] sm:$0x1]
      %v902 = vld [vmem:[%s769 + $0x28] sm:$0xf]
      %v903 = vld [vmem:[%s769 + $0x2c] sm:$0x1]
      %v904 = vld [vmem:[%s769 + $0x30] sm:$0xf]
      %v905 = vld [vmem:[%s769 + $0x34] sm:$0x1]
      %v906 = vld [vmem:[%s769 + $0x38] sm:$0xf]
      %v907 = vld [vmem:[%s769 + $0x3c] sm:$0x1]
      %v909 = vshrl.u32 %v892, 16
      %v911 = vrot.slane %v909, 4
      %v912 = vshll.u32 %v892, 16
      %v914 = vrot.slane %v912, 5
      %v915 = vor.u32 %v911, %v914
      %v916 = vrot.slane %v915, 4
      %v918 = vshll.u32 %v893, 16
      %v920 = vrot.slane %v918, 5
      %v921 = vsel %vm455, %v916, %v920
      %v923 = vshrl.u32 %v894, 16
      %v925 = vrot.slane %v923, 4
      %v926 = vshll.u32 %v894, 16
      %v928 = vrot.slane %v926, 5
      %v929 = vor.u32 %v925, %v928
      %v930 = vrot.slane %v929, 4
      %v932 = vshll.u32 %v895, 16
      %v934 = vrot.slane %v932, 5
      %v935 = vsel %vm455, %v930, %v934
      %v937 = vshrl.u32 %v896, 16
      %v939 = vrot.slane %v937, 4
      %v940 = vshll.u32 %v896, 16
      %v942 = vrot.slane %v940, 5
      %v943 = vor.u32 %v939, %v942
      %v944 = vrot.slane %v943, 4
      %v946 = vshll.u32 %v897, 16
      %v948 = vrot.slane %v946, 5
      %v949 = vsel %vm455, %v944, %v948
      %v951 = vshrl.u32 %v898, 16
      %v953 = vrot.slane %v951, 4
      %v954 = vshll.u32 %v898, 16
      %v956 = vrot.slane %v954, 5
      %v957 = vor.u32 %v953, %v956
      %v958 = vrot.slane %v957, 4
      %v960 = vshll.u32 %v899, 16
      %v962 = vrot.slane %v960, 5
      %v963 = vsel %vm455, %v958, %v962
      %v965 = vshrl.u32 %v900, 16
      %v967 = vrot.slane %v965, 4
      %v968 = vshll.u32 %v900, 16
      %v970 = vrot.slane %v968, 5
      %v971 = vor.u32 %v967, %v970
      %v972 = vrot.slane %v971, 4
      %v974 = vshll.u32 %v901, 16
      %v976 = vrot.slane %v974, 5
      %v977 = vsel %vm455, %v972, %v976
      %v979 = vshrl.u32 %v902, 16
      %v981 = vrot.slane %v979, 4
      %v982 = vshll.u32 %v902, 16
      %v984 = vrot.slane %v982, 5
      %v985 = vor.u32 %v981, %v984
      %v986 = vrot.slane %v985, 4
      %v988 = vshll.u32 %v903, 16
      %v990 = vrot.slane %v988, 5
      %v991 = vsel %vm455, %v986, %v990
      %v993 = vshrl.u32 %v904, 16
      %v995 = vrot.slane %v993, 4
      %v996 = vshll.u32 %v904, 16
      %v998 = vrot.slane %v996, 5
      %v999 = vor.u32 %v995, %v998
      %v1000 = vrot.slane %v999, 4
      %v1002 = vshll.u32 %v905, 16
      %v1004 = vrot.slane %v1002, 5
      %v1005 = vsel %vm455, %v1000, %v1004
      %v1007 = vshrl.u32 %v906, 16
      %v1009 = vrot.slane %v1007, 4
      %v1010 = vshll.u32 %v906, 16
      %v1012 = vrot.slane %v1010, 5
      %v1013 = vor.u32 %v1009, %v1012
      %v1014 = vrot.slane %v1013, 4
      %v1016 = vshll.u32 %v907, 16
      %v1018 = vrot.slane %v1016, 5
      %v1019 = vsel %vm455, %v1014, %v1018
      %v1020 = vld [vmem:[%s778 + $0x8] sm:$0xf]
      %v1021 = vld [vmem:[%s778 + $0xc] sm:$0xf]
      %v1022 = vunpack.c.l.b16 %v921
      %v1023 = vunpack.c.l.b16 %v935
      %v1024 = vunpack.c.l.b16 %v949
      %v1025 = vunpack.c.l.b16 %v963
      %v1026 = vunpack.c.l.b16 %v977
      %v1027 = vunpack.c.l.b16 %v991
      %v1028 = vunpack.c.l.b16 %v1005
      %v1029 = vunpack.c.l.b16 %v1019
      %v1030 = vpack.c.b16 %v1023, %v1022
      %v1031 = vpack.c.b16 %v1025, %v1024
      %v1032 = vpack.c.b16 %v1027, %v1026
      %v1033 = vpack.c.b16 %v1029, %v1028
      %v1036 = vunpack.c.l.b16 %v1020
      %v1037 = vunpack.c.l.b16 %v1021
      %v1038 = vpack.c.b16 %v1037, %v1036
      %v1041 = vsel %vm588, %v1030, 0
      %v1044 = vsel %vm588, %v1031, 0
      %v1047 = vsel %vm588, %v1032, 0
      %v1050 = vsel %vm588, %v1033, 0
      %1052 = vmatprep.subr.bf16.mxu0 0
      %1053 = vmatpush1.bf16.msra.mxu0 %v1038
      %1054 = vmatprep.subr.bf16.mxu0 0
      %1055 = vmatpush1.bf16.msra.mxu0 0
      %1056 = vmatprep.subr.bf16.mxu0 0
      %1057 = vmatpush1.bf16.msra.mxu0 0
      %1058 = vmatprep.subr.bf16.mxu0 0
      %1059 = vmatpush1.bf16.msra.mxu0 0
      %1060 = vmatprep.subr.bf16.mxu0 0
      %1061 = vmatpush1.bf16.msra.mxu0 0
      %1062 = vmatprep.subr.bf16.mxu0 0
      %1063 = vmatpush1.bf16.msra.mxu0 0
      %1064 = vmatprep.subr.bf16.mxu0 0
      %1065 = vmatpush1.bf16.msra.mxu0 0
      %1066 = vmatprep.subr.bf16.mxu0 0
      %1067 = vmatpush1.bf16.msra.mxu0 0
      %1068 = vmatprep.subr.bf16.mxu0 0
      %1069 = vmatpush1.bf16.msra.mxu0 0
      %1070 = vmatprep.subr.bf16.mxu0 0
      %1071 = vmatpush1.bf16.msra.mxu0 0
      %1072 = vmatprep.subr.bf16.mxu0 0
      %1073 = vmatpush1.bf16.msra.mxu0 0
      %1074 = vmatprep.subr.bf16.mxu0 0
      %1075 = vmatpush1.bf16.msra.mxu0 0
      %1076 = vmatprep.subr.bf16.mxu0 0
      %1077 = vmatpush1.bf16.msra.mxu0 0
      %1078 = vmatprep.subr.bf16.mxu0 0
      %1079 = vmatpush1.bf16.msra.mxu0 0
      %1080 = vmatprep.subr.bf16.mxu0 0
      %1081 = vmatpush1.bf16.msra.mxu0 0
      %1082 = vmatprep.subr.bf16.mxu0 0
      %1083 = vmatpush1.bf16.msra.mxu0 0
      %1084 = vmatprep.mubr.bf16.mxu0 0
      %1085 = vmatmul.mubr.bf16.gmra.mrb[0].mxu0 %v1041
      %v1086 = vpop.f32.mrb[0].mxu0
      %v1087 = vadd.f32 0.0, %v1086
      %v1088 = vpop.f32.mrb[0].mxu0
      %v1089 = vpop.f32.mrb[0].mxu0
      %v1090 = vadd.f32 0.0, %v1089
      %v1091 = vpop.f32.mrb[0].mxu0
      %1092 = vmatprep.mubr.bf16.mxu0 0
      %1093 = vmatmul.mubr.bf16.gmra.mrb[0].mxu0 %v1044
      %v1094 = vpop.f32.mrb[0].mxu0
      %v1095 = vadd.f32 0.0, %v1094
      %v1096 = vpop.f32.mrb[0].mxu0
      %v1097 = vpop.f32.mrb[0].mxu0
      %v1098 = vadd.f32 0.0, %v1097
      %v1099 = vpop.f32.mrb[0].mxu0
      %1100 = vmatprep.mubr.bf16.mxu0 0
      %1101 = vmatmul.mubr.bf16.gmra.mrb[0].mxu0 %v1047
      %v1102 = vpop.f32.mrb[0].mxu0
      %v1103 = vadd.f32 0.0, %v1102
      %v1104 = vpop.f32.mrb[0].mxu0
      %v1105 = vpop.f32.mrb[0].mxu0
      %v1106 = vadd.f32 0.0, %v1105
      %v1107 = vpop.f32.mrb[0].mxu0
      %1108 = vmatprep.mubr.bf16.mxu0 0
      %1109 = vmatmul.mubr.bf16.gmra.mrb[0].mxu0 %v1050
      %v1110 = vpop.f32.mrb[0].mxu0
      %v1111 = vadd.f32 0.0, %v1110
      %v1112 = vpop.f32.mrb[0].mxu0
      %v1113 = vpop.f32.mrb[0].mxu0
      %v1114 = vadd.f32 0.0, %v1113
      %v1115 = vpop.f32.mrb[0].mxu0
      %1116 = vdwg.mxu0
      %v1117 = vadd.f32 %v884, %v1087
      %v1118 = vadd.f32 %v885, %v1090
      %v1119 = vadd.f32 %v886, %v1095
      %v1120 = vadd.f32 %v887, %v1098
      %v1121 = vadd.f32 %v888, %v1103
      %v1122 = vadd.f32 %v889, %v1106
      %v1123 = vadd.f32 %v890, %v1111
      %v1124 = vadd.f32 %v891, %v1114
      %v1126 = vlaneseq
      %v1127 = vshrl.u32 %v1126, 7
      %v1128 = vsub.s32 0, %v1127
      %v1129 = vrot.slane %v361, %v1128
      %v1131 = vmul.f32 %v1117, %v1129
      %v1132 = vmul.f32 %v1118, %v1129
      %v1133 = vmul.f32 %v1119, %v1129
      %v1134 = vmul.f32 %v1120, %v1129
      %v1135 = vmul.f32 %v1121, %v1129
      %v1136 = vmul.f32 %v1122, %v1129
      %v1137 = vmul.f32 %v1123, %v1129
      %v1138 = vmul.f32 %v1124, %v1129
      %v1140 = vlaneseq
      %v1141 = vshrl.u32 %v1140, 7
      %v1142 = vsub.s32 0, %v1141
      %v1143 = vrot.slane %v362, %v1142
      %v1145 = vadd.f32 %v1131, %v1143
      %v1146 = vadd.f32 %v1132, %v1143
      %v1147 = vadd.f32 %v1133, %v1143
      %v1148 = vadd.f32 %v1134, %v1143
      %v1149 = vadd.f32 %v1135, %v1143
      %v1150 = vadd.f32 %v1136, %v1143
      %v1151 = vadd.f32 %v1137, %v1143
      %v1152 = vadd.f32 %v1138, %v1143
      %v1153 = vmax.f32 %v1145, 0.0
      %v1154 = vmax.f32 %v1146, 0.0
      %v1155 = vmax.f32 %v1147, 0.0
      %v1156 = vmax.f32 %v1148, 0.0
      %v1157 = vmax.f32 %v1149, 0.0
      %v1158 = vmax.f32 %v1150, 0.0
      %v1159 = vmax.f32 %v1151, 0.0
      %v1160 = vmax.f32 %v1152, 0.0
      %v1161 = vpack.c.bf16 %v1154, %v1153
      %v1162 = vpack.c.bf16 %v1156, %v1155
      %v1163 = vpack.c.bf16 %v1158, %v1157
      %v1164 = vpack.c.bf16 %v1160, %v1159
      %v1169 = vunpack.c.l.b16 %v1161
      %v1170 = vunpack.c.h.b16 %v1161
      %v1171 = vunpack.c.l.b16 %v1162
      %v1172 = vunpack.c.h.b16 %v1162
      %v1173 = vunpack.c.l.b16 %v1163
      %v1174 = vunpack.c.h.b16 %v1163
      %v1175 = vunpack.c.l.b16 %v1164
      %v1176 = vunpack.c.h.b16 %v1164
      %v1177 = vpack.c.b16 %v1169, %v1169
      %v1178 = vpack.c.b16 %v1170, %v1170
      %v1179 = vpack.c.b16 %v1171, %v1171
      %v1180 = vpack.c.b16 %v1172, %v1172
      %v1181 = vpack.c.b16 %v1173, %v1173
      %v1182 = vpack.c.b16 %v1174, %v1174
      %v1183 = vpack.c.b16 %v1175, %v1175
      %v1184 = vpack.c.b16 %v1176, %v1176
      %v1186 = vshrl.u32 %v1177, 16
      %v1188 = vrot.slane %v1186, 7
      %v1189 = vshll.u32 %v1177, 16
      %v1191 = vor.u32 %v1188, %v1189
      %v1192 = vrot.slane %v1188, 4
      %v1194 = vshrl.u32 %v1178, 16
      %v1196 = vrot.slane %v1194, 7
      %v1197 = vshll.u32 %v1178, 16
      %v1199 = vor.u32 %v1196, %v1197
      %v1200 = vrot.slane %v1196, 4
      %v1202 = vshrl.u32 %v1179, 16
      %v1204 = vrot.slane %v1202, 7
      %v1205 = vshll.u32 %v1179, 16
      %v1207 = vor.u32 %v1204, %v1205
      %v1208 = vrot.slane %v1204, 4
      %v1210 = vshrl.u32 %v1180, 16
      %v1212 = vrot.slane %v1210, 7
      %v1213 = vshll.u32 %v1180, 16
      %v1215 = vor.u32 %v1212, %v1213
      %v1216 = vrot.slane %v1212, 4
      %v1218 = vshrl.u32 %v1181, 16
      %v1220 = vrot.slane %v1218, 7
      %v1221 = vshll.u32 %v1181, 16
      %v1223 = vor.u32 %v1220, %v1221
      %v1224 = vrot.slane %v1220, 4
      %v1226 = vshrl.u32 %v1182, 16
      %v1228 = vrot.slane %v1226, 7
      %v1229 = vshll.u32 %v1182, 16
      %v1231 = vor.u32 %v1228, %v1229
      %v1232 = vrot.slane %v1228, 4
      %v1234 = vshrl.u32 %v1183, 16
      %v1236 = vrot.slane %v1234, 7
      %v1237 = vshll.u32 %v1183, 16
      %v1239 = vor.u32 %v1236, %v1237
      %v1240 = vrot.slane %v1236, 4
      %v1242 = vshrl.u32 %v1184, 16
      %v1244 = vrot.slane %v1242, 7
      %v1245 = vshll.u32 %v1184, 16
      %v1247 = vor.u32 %v1244, %v1245
      %v1248 = vrot.slane %v1244, 4
      %s1265 = scalar_lea.vmem [#allocation2], 8
      %vm1266 = vcmask 1043456
      %vm1267 = vmand %vm1266, %vm403
      %v1268 = vld [vmem:[%s1265] sm:$0xf]
      %v1269 = vsel %vm1267, %v1191, %v1268
      %1270 = vst [vmem:[%s1265] sm:$0xf] %v1269
      %v1271 = vld [vmem:[%s1265 + $0x4] sm:$0x1]
      %v1272 = vsel %vm372, %v1192, %v1271
      %1273 = vst [vmem:[%s1265 + $0x4] sm:$0x1] %v1272
      %v1274 = vld [vmem:[%s1265 + $0x8] sm:$0xf]
      %v1275 = vsel %vm1267, %v1199, %v1274
      %1276 = vst [vmem:[%s1265 + $0x8] sm:$0xf] %v1275
      %v1277 = vld [vmem:[%s1265 + $0xc] sm:$0x1]
      %v1278 = vsel %vm372, %v1200, %v1277
      %1279 = vst [vmem:[%s1265 + $0xc] sm:$0x1] %v1278
      %v1280 = vld [vmem:[%s1265 + $0x10] sm:$0xf]
      %v1281 = vsel %vm1267, %v1207, %v1280
      %1282 = vst [vmem:[%s1265 + $0x10] sm:$0xf] %v1281
      %v1283 = vld [vmem:[%s1265 + $0x14] sm:$0x1]
      %v1284 = vsel %vm372, %v1208, %v1283
      %1285 = vst [vmem:[%s1265 + $0x14] sm:$0x1] %v1284
      %v1286 = vld [vmem:[%s1265 + $0x18] sm:$0xf]
      %v1287 = vsel %vm1267, %v1215, %v1286
      %1288 = vst [vmem:[%s1265 + $0x18] sm:$0xf] %v1287
      %v1289 = vld [vmem:[%s1265 + $0x1c] sm:$0x1]
      %v1290 = vsel %vm372, %v1216, %v1289
      %1291 = vst [vmem:[%s1265 + $0x1c] sm:$0x1] %v1290
      %v1292 = vld [vmem:[%s1265 + $0x20] sm:$0xf]
      %v1293 = vsel %vm1267, %v1223, %v1292
      %1294 = vst [vmem:[%s1265 + $0x20] sm:$0xf] %v1293
      %v1295 = vld [vmem:[%s1265 + $0x24] sm:$0x1]
      %v1296 = vsel %vm372, %v1224, %v1295
      %1297 = vst [vmem:[%s1265 + $0x24] sm:$0x1] %v1296
      %v1298 = vld [vmem:[%s1265 + $0x28] sm:$0xf]
      %v1299 = vsel %vm1267, %v1231, %v1298
      %1300 = vst [vmem:[%s1265 + $0x28] sm:$0xf] %v1299
      %v1301 = vld [vmem:[%s1265 + $0x2c] sm:$0x1]
      %v1302 = vsel %vm372, %v1232, %v1301
      %1303 = vst [vmem:[%s1265 + $0x2c] sm:$0x1] %v1302
      %v1304 = vld [vmem:[%s1265 + $0x30] sm:$0xf]
      %v1305 = vsel %vm1267, %v1239, %v1304
      %1306 = vst [vmem:[%s1265 + $0x30] sm:$0xf] %v1305
      %v1307 = vld [vmem:[%s1265 + $0x34] sm:$0x1]
      %v1308 = vsel %vm372, %v1240, %v1307
      %1309 = vst [vmem:[%s1265 + $0x34] sm:$0x1] %v1308
      %v1310 = vld [vmem:[%s1265 + $0x38] sm:$0xf]
      %v1311 = vsel %vm1267, %v1247, %v1310
      %1312 = vst [vmem:[%s1265 + $0x38] sm:$0xf] %v1311
      %v1313 = vld [vmem:[%s1265 + $0x3c] sm:$0x1]
      %v1314 = vsel %vm372, %v1248, %v1313
      %1315 = vst [vmem:[%s1265 + $0x3c] sm:$0x1] %v1314
      %v1316 = vld [vmem:[#allocation2] sm:$0xf]
      %v1317 = vld [vmem:[#allocation2 + $0x8] sm:$0xf]
      %v1318 = vld [vmem:[#allocation2 + $0x10] sm:$0xf]
      %v1319 = vld [vmem:[#allocation2 + $0x18] sm:$0xf]
      %v1320 = vld [vmem:[#allocation2 + $0x20] sm:$0xf]
      %v1321 = vld [vmem:[#allocation2 + $0x28] sm:$0xf]
      %v1322 = vld [vmem:[#allocation2 + $0x30] sm:$0xf]
      %v1323 = vld [vmem:[#allocation2 + $0x38] sm:$0xf]
      %v1324 = vld [vmem:[#allocation2 + $0x4] sm:$0x1]
      %v1325 = vld [vmem:[#allocation2 + $0xc] sm:$0x1]
      %v1326 = vld [vmem:[#allocation2 + $0x14] sm:$0x1]
      %v1327 = vld [vmem:[#allocation2 + $0x1c] sm:$0x1]
      %v1328 = vld [vmem:[#allocation2 + $0x24] sm:$0x1]
      %v1329 = vld [vmem:[#allocation2 + $0x2c] sm:$0x1]
      %v1330 = vld [vmem:[#allocation2 + $0x34] sm:$0x1]
      %v1331 = vld [vmem:[#allocation2 + $0x3c] sm:$0x1]
      %v1332 = vld [vmem:[#allocation2] sm:$0xe]
      %v1333 = vld [vmem:[#allocation2 + $0x8] sm:$0xe]
      %v1334 = vld [vmem:[#allocation2 + $0x10] sm:$0xe]
      %v1335 = vld [vmem:[#allocation2 + $0x18] sm:$0xe]
      %v1336 = vld [vmem:[#allocation2 + $0x20] sm:$0xe]
      %v1337 = vld [vmem:[#allocation2 + $0x28] sm:$0xe]
      %v1338 = vld [vmem:[#allocation2 + $0x30] sm:$0xe]
      %v1339 = vld [vmem:[#allocation2 + $0x38] sm:$0xe]
      %v1356 = vunpack.c.l.b16 %v1316
      %v1357 = vunpack.c.l.b16 %v1324
      %v1358 = vunpack.c.l.b16 %v1317
      %v1359 = vunpack.c.l.b16 %v1325
      %v1360 = vunpack.c.l.b16 %v1318
      %v1361 = vunpack.c.l.b16 %v1326
      %v1362 = vunpack.c.l.b16 %v1319
      %v1363 = vunpack.c.l.b16 %v1327
      %v1364 = vunpack.c.l.b16 %v1320
      %v1365 = vunpack.c.l.b16 %v1328
      %v1366 = vunpack.c.l.b16 %v1321
      %v1367 = vunpack.c.l.b16 %v1329
      %v1368 = vunpack.c.l.b16 %v1322
      %v1369 = vunpack.c.l.b16 %v1330
      %v1370 = vunpack.c.l.b16 %v1323
      %v1371 = vunpack.c.l.b16 %v1331
      %v1372 = vpack.c.b16 %v1357, %v1356
      %v1373 = vpack.c.b16 %v1359, %v1358
      %v1374 = vpack.c.b16 %v1361, %v1360
      %v1375 = vpack.c.b16 %v1363, %v1362
      %v1376 = vpack.c.b16 %v1365, %v1364
      %v1377 = vpack.c.b16 %v1367, %v1366
      %v1378 = vpack.c.b16 %v1369, %v1368
      %v1379 = vpack.c.b16 %v1371, %v1370
      %v1381 = vshrl.u32 %v1372, 16
      %v1383 = vshll.u32 %v1372, 16
      %v1385 = vrot.slane %v1383, 1
      %v1386 = vor.u32 %v1381, %v1385
      %v1388 = vshrl.u32 %v1373, 16
      %v1390 = vshll.u32 %v1373, 16
      %v1392 = vrot.slane %v1390, 1
      %v1393 = vor.u32 %v1388, %v1392
      %v1395 = vshrl.u32 %v1374, 16
      %v1397 = vshll.u32 %v1374, 16
      %v1399 = vrot.slane %v1397, 1
      %v1400 = vor.u32 %v1395, %v1399
      %v1402 = vshrl.u32 %v1375, 16
      %v1404 = vshll.u32 %v1375, 16
      %v1406 = vrot.slane %v1404, 1
      %v1407 = vor.u32 %v1402, %v1406
      %v1409 = vshrl.u32 %v1376, 16
      %v1411 = vshll.u32 %v1376, 16
      %v1413 = vrot.slane %v1411, 1
      %v1414 = vor.u32 %v1409, %v1413
      %v1416 = vshrl.u32 %v1377, 16
      %v1418 = vshll.u32 %v1377, 16
      %v1420 = vrot.slane %v1418, 1
      %v1421 = vor.u32 %v1416, %v1420
      %v1423 = vshrl.u32 %v1378, 16
      %v1425 = vshll.u32 %v1378, 16
      %v1427 = vrot.slane %v1425, 1
      %v1428 = vor.u32 %v1423, %v1427
      %v1430 = vshrl.u32 %v1379, 16
      %v1432 = vshll.u32 %v1379, 16
      %v1434 = vrot.slane %v1432, 1
      %v1435 = vor.u32 %v1430, %v1434
      %v1444 = vunpack.c.l.b16 %v1332
      %v1445 = vunpack.c.l.b16 %v1333
      %v1446 = vunpack.c.l.b16 %v1334
      %v1447 = vunpack.c.l.b16 %v1335
      %v1448 = vunpack.c.l.b16 %v1336
      %v1449 = vunpack.c.l.b16 %v1337
      %v1450 = vunpack.c.l.b16 %v1338
      %v1451 = vunpack.c.l.b16 %v1339
      %v1452 = vpack.c.b16 %v1357, %v1444
      %v1453 = vpack.c.b16 %v1359, %v1445
      %v1454 = vpack.c.b16 %v1361, %v1446
      %v1455 = vpack.c.b16 %v1363, %v1447
      %v1456 = vpack.c.b16 %v1365, %v1448
      %v1457 = vpack.c.b16 %v1367, %v1449
      %v1458 = vpack.c.b16 %v1369, %v1450
      %v1459 = vpack.c.b16 %v1371, %v1451
      %v1460 = vrot.slane %v1452, 1
      %v1461 = vrot.slane %v1453, 1
      %v1462 = vrot.slane %v1454, 1
      %v1463 = vrot.slane %v1455, 1
      %v1464 = vrot.slane %v1456, 1
      %v1465 = vrot.slane %v1457, 1
      %v1466 = vrot.slane %v1458, 1
      %v1467 = vrot.slane %v1459, 1
      %v1468 = vunpack.c.l.b16 %v1386
      %v1469 = vunpack.c.l.b16 %v1460
      %v1470 = vunpack.c.l.b16 %v1393
      %v1471 = vunpack.c.l.b16 %v1461
      %v1472 = vunpack.c.l.b16 %v1400
      %v1473 = vunpack.c.l.b16 %v1462
      %v1474 = vunpack.c.l.b16 %v1407
      %v1475 = vunpack.c.l.b16 %v1463
      %v1476 = vunpack.c.l.b16 %v1414
      %v1477 = vunpack.c.l.b16 %v1464
      %v1478 = vunpack.c.l.b16 %v1421
      %v1479 = vunpack.c.l.b16 %v1465
      %v1480 = vunpack.c.l.b16 %v1428
      %v1481 = vunpack.c.l.b16 %v1466
      %v1482 = vunpack.c.l.b16 %v1435
      %v1483 = vunpack.c.l.b16 %v1467
      %v1484 = vld [vmem:[%s2] sm:$0xf]
      %v1485 = vld [vmem:[%s2 + $0x4] sm:$0xf]
      %v1486 = vld [vmem:[%s2 + $0x8] sm:$0xf]
      %v1487 = vld [vmem:[%s2 + $0xc] sm:$0xf]
      %v1488 = vld [vmem:[%s2 + $0x10] sm:$0xf]
      %v1489 = vld [vmem:[%s2 + $0x14] sm:$0xf]
      %v1490 = vld [vmem:[%s2 + $0x18] sm:$0xf]
      %v1491 = vld [vmem:[%s2 + $0x1c] sm:$0xf]
      %v1492 = vld [vmem:[%s2 + $0x20] sm:$0xf]
      %v1493 = vld [vmem:[%s2 + $0x24] sm:$0xf]
      %v1494 = vld [vmem:[%s2 + $0x28] sm:$0xf]
      %v1495 = vld [vmem:[%s2 + $0x2c] sm:$0xf]
      %v1496 = vld [vmem:[%s2 + $0x30] sm:$0xf]
      %v1497 = vld [vmem:[%s2 + $0x34] sm:$0xf]
      %v1498 = vld [vmem:[%s2 + $0x38] sm:$0xf]
      %v1499 = vld [vmem:[%s2 + $0x3c] sm:$0xf]
      %v1500 = vld [vmem:[%s2 + $0x40] sm:$0xf]
      %v1501 = vld [vmem:[%s2 + $0x44] sm:$0xf]
      %v1502 = vld [vmem:[%s2 + $0x48] sm:$0xf]
      %v1503 = vld [vmem:[%s2 + $0x4c] sm:$0xf]
      %v1504 = vld [vmem:[%s2 + $0x50] sm:$0xf]
      %v1505 = vld [vmem:[%s2 + $0x54] sm:$0xf]
      %v1506 = vld [vmem:[%s2 + $0x58] sm:$0xf]
      %v1507 = vld [vmem:[%s2 + $0x5c] sm:$0xf]
      %v1508 = vld [vmem:[%s2 + $0x60] sm:$0xf]
      %v1509 = vld [vmem:[%s2 + $0x64] sm:$0xf]
      %v1510 = vld [vmem:[%s2 + $0x68] sm:$0xf]
      %v1511 = vld [vmem:[%s2 + $0x6c] sm:$0xf]
      %v1512 = vld [vmem:[%s2 + $0x70] sm:$0xf]
      %v1513 = vld [vmem:[%s2 + $0x74] sm:$0xf]
      %v1514 = vld [vmem:[%s2 + $0x78] sm:$0xf]
      %v1515 = vld [vmem:[%s2 + $0x7c] sm:$0xf]
      %v1516 = vld [vmem:[%s2 + $0x80] sm:$0xf]
      %v1517 = vld [vmem:[%s2 + $0x84] sm:$0xf]
      %v1518 = vld [vmem:[%s2 + $0x88] sm:$0xf]
      %v1519 = vld [vmem:[%s2 + $0x8c] sm:$0xf]
      %v1520 = vld [vmem:[%s2 + $0x90] sm:$0xf]
      %v1521 = vld [vmem:[%s2 + $0x94] sm:$0xf]
      %v1522 = vld [vmem:[%s2 + $0x98] sm:$0xf]
      %v1523 = vld [vmem:[%s2 + $0x9c] sm:$0xf]
      %v1524 = vld [vmem:[%s2 + $0xa0] sm:$0xf]
      %v1525 = vld [vmem:[%s2 + $0xa4] sm:$0xf]
      %v1526 = vld [vmem:[%s2 + $0xa8] sm:$0xf]
      %v1527 = vld [vmem:[%s2 + $0xac] sm:$0xf]
      %v1528 = vld [vmem:[%s2 + $0xb0] sm:$0xf]
      %v1529 = vld [vmem:[%s2 + $0xb4] sm:$0xf]
      %v1530 = vld [vmem:[%s2 + $0xb8] sm:$0xf]
      %v1531 = vld [vmem:[%s2 + $0xbc] sm:$0xf]
      %v1532 = vld [vmem:[%s1265] sm:$0xf]
      %v1533 = vld [vmem:[%s1265 + $0x8] sm:$0xf]
      %v1534 = vld [vmem:[%s1265 + $0x10] sm:$0xf]
      %v1535 = vld [vmem:[%s1265 + $0x18] sm:$0xf]
      %v1536 = vld [vmem:[%s1265 + $0x20] sm:$0xf]
      %v1537 = vld [vmem:[%s1265 + $0x28] sm:$0xf]
      %v1538 = vld [vmem:[%s1265 + $0x30] sm:$0xf]
      %v1539 = vld [vmem:[%s1265 + $0x38] sm:$0xf]
      %v1540 = vld [vmem:[%s1265 + $0x4] sm:$0x1]
      %v1541 = vld [vmem:[%s1265 + $0xc] sm:$0x1]
      %v1542 = vld [vmem:[%s1265 + $0x14] sm:$0x1]
      %v1543 = vld [vmem:[%s1265 + $0x1c] sm:$0x1]
      %v1544 = vld [vmem:[%s1265 + $0x24] sm:$0x1]
      %v1545 = vld [vmem:[%s1265 + $0x2c] sm:$0x1]
      %v1546 = vld [vmem:[%s1265 + $0x34] sm:$0x1]
      %v1547 = vld [vmem:[%s1265 + $0x3c] sm:$0x1]
      %v1548 = vld [vmem:[%s1265] sm:$0xe]
      %v1549 = vld [vmem:[%s1265 + $0x8] sm:$0xe]
      %v1550 = vld [vmem:[%s1265 + $0x10] sm:$0xe]
      %v1551 = vld [vmem:[%s1265 + $0x18] sm:$0xe]
      %v1552 = vld [vmem:[%s1265 + $0x20] sm:$0xe]
      %v1553 = vld [vmem:[%s1265 + $0x28] sm:$0xe]
      %v1554 = vld [vmem:[%s1265 + $0x30] sm:$0xe]
      %v1555 = vld [vmem:[%s1265 + $0x38] sm:$0xe]
      %v1572 = vunpack.c.l.b16 %v1532
      %v1573 = vunpack.c.l.b16 %v1540
      %v1574 = vunpack.c.l.b16 %v1533
      %v1575 = vunpack.c.l.b16 %v1541
      %v1576 = vunpack.c.l.b16 %v1534
      %v1577 = vunpack.c.l.b16 %v1542
      %v1578 = vunpack.c.l.b16 %v1535
      %v1579 = vunpack.c.l.b16 %v1543
      %v1580 = vunpack.c.l.b16 %v1536
      %v1581 = vunpack.c.l.b16 %v1544
      %v1582 = vunpack.c.l.b16 %v1537
      %v1583 = vunpack.c.l.b16 %v1545
      %v1584 = vunpack.c.l.b16 %v1538
      %v1585 = vunpack.c.l.b16 %v1546
      %v1586 = vunpack.c.l.b16 %v1539
      %v1587 = vunpack.c.l.b16 %v1547
      %v1588 = vpack.c.b16 %v1573, %v1572
      %v1589 = vpack.c.b16 %v1575, %v1574
      %v1590 = vpack.c.b16 %v1577, %v1576
      %v1591 = vpack.c.b16 %v1579, %v1578
      %v1592 = vpack.c.b16 %v1581, %v1580
      %v1593 = vpack.c.b16 %v1583, %v1582
      %v1594 = vpack.c.b16 %v1585, %v1584
      %v1595 = vpack.c.b16 %v1587, %v1586
      %v1597 = vshrl.u32 %v1588, 16
      %v1599 = vshll.u32 %v1588, 16
      %v1601 = vrot.slane %v1599, 1
      %v1602 = vor.u32 %v1597, %v1601
      %v1604 = vshrl.u32 %v1589, 16
      %v1606 = vshll.u32 %v1589, 16
      %v1608 = vrot.slane %v1606, 1
      %v1609 = vor.u32 %v1604, %v1608
      %v1611 = vshrl.u32 %v1590, 16
      %v1613 = vshll.u32 %v1590, 16
      %v1615 = vrot.slane %v1613, 1
      %v1616 = vor.u32 %v1611, %v1615
      %v1618 = vshrl.u32 %v1591, 16
      %v1620 = vshll.u32 %v1591, 16
      %v1622 = vrot.slane %v1620, 1
      %v1623 = vor.u32 %v1618, %v1622
      %v1625 = vshrl.u32 %v1592, 16
      %v1627 = vshll.u32 %v1592, 16
      %v1629 = vrot.slane %v1627, 1
      %v1630 = vor.u32 %v1625, %v1629
      %v1632 = vshrl.u32 %v1593, 16
      %v1634 = vshll.u32 %v1593, 16
      %v1636 = vrot.slane %v1634, 1
      %v1637 = vor.u32 %v1632, %v1636
      %v1639 = vshrl.u32 %v1594, 16
      %v1641 = vshll.u32 %v1594, 16
      %v1643 = vrot.slane %v1641, 1
      %v1644 = vor.u32 %v1639, %v1643
      %v1646 = vshrl.u32 %v1595, 16
      %v1648 = vshll.u32 %v1595, 16
      %v1650 = vrot.slane %v1648, 1
      %v1651 = vor.u32 %v1646, %v1650
      %v1660 = vunpack.c.l.b16 %v1548
      %v1661 = vunpack.c.l.b16 %v1549
      %v1662 = vunpack.c.l.b16 %v1550
      %v1663 = vunpack.c.l.b16 %v1551
      %v1664 = vunpack.c.l.b16 %v1552
      %v1665 = vunpack.c.l.b16 %v1553
      %v1666 = vunpack.c.l.b16 %v1554
      %v1667 = vunpack.c.l.b16 %v1555
      %v1668 = vpack.c.b16 %v1573, %v1660
      %v1669 = vpack.c.b16 %v1575, %v1661
      %v1670 = vpack.c.b16 %v1577, %v1662
      %v1671 = vpack.c.b16 %v1579, %v1663
      %v1672 = vpack.c.b16 %v1581, %v1664
      %v1673 = vpack.c.b16 %v1583, %v1665
      %v1674 = vpack.c.b16 %v1585, %v1666
      %v1675 = vpack.c.b16 %v1587, %v1667
      %v1676 = vrot.slane %v1668, 1
      %v1677 = vrot.slane %v1669, 1
      %v1678 = vrot.slane %v1670, 1
      %v1679 = vrot.slane %v1671, 1
      %v1680 = vrot.slane %v1672, 1
      %v1681 = vrot.slane %v1673, 1
      %v1682 = vrot.slane %v1674, 1
      %v1683 = vrot.slane %v1675, 1
      %v1684 = vunpack.c.l.b16 %v1602
      %v1685 = vunpack.c.l.b16 %v1676
      %v1686 = vunpack.c.l.b16 %v1609
      %v1687 = vunpack.c.l.b16 %v1677
      %v1688 = vunpack.c.l.b16 %v1616
      %v1689 = vunpack.c.l.b16 %v1678
      %v1690 = vunpack.c.l.b16 %v1623
      %v1691 = vunpack.c.l.b16 %v1679
      %v1692 = vunpack.c.l.b16 %v1630
      %v1693 = vunpack.c.l.b16 %v1680
      %v1694 = vunpack.c.l.b16 %v1637
      %v1695 = vunpack.c.l.b16 %v1681
      %v1696 = vunpack.c.l.b16 %v1644
      %v1697 = vunpack.c.l.b16 %v1682
      %v1698 = vunpack.c.l.b16 %v1651
      %v1699 = vunpack.c.l.b16 %v1683
      %s1700 = scalar_lea.vmem %s2, 192
      %v1701 = vld [vmem:[%s1700] sm:$0xf]
      %v1702 = vld [vmem:[%s1700 + $0x4] sm:$0xf]
      %v1703 = vld [vmem:[%s1700 + $0x8] sm:$0xf]
      %v1704 = vld [vmem:[%s1700 + $0xc] sm:$0xf]
      %v1705 = vld [vmem:[%s1700 + $0x10] sm:$0xf]
      %v1706 = vld [vmem:[%s1700 + $0x14] sm:$0xf]
      %v1707 = vld [vmem:[%s1700 + $0x18] sm:$0xf]
      %v1708 = vld [vmem:[%s1700 + $0x1c] sm:$0xf]
      %v1709 = vld [vmem:[%s1700 + $0x20] sm:$0xf]
      %v1710 = vld [vmem:[%s1700 + $0x24] sm:$0xf]
      %v1711 = vld [vmem:[%s1700 + $0x28] sm:$0xf]
      %v1712 = vld [vmem:[%s1700 + $0x2c] sm:$0xf]
      %v1713 = vld [vmem:[%s1700 + $0x30] sm:$0xf]
      %v1714 = vld [vmem:[%s1700 + $0x34] sm:$0xf]
      %v1715 = vld [vmem:[%s1700 + $0x38] sm:$0xf]
      %v1716 = vld [vmem:[%s1700 + $0x3c] sm:$0xf]
      %v1717 = vld [vmem:[%s1700 + $0x40] sm:$0xf]
      %v1718 = vld [vmem:[%s1700 + $0x44] sm:$0xf]
      %v1719 = vld [vmem:[%s1700 + $0x48] sm:$0xf]
      %v1720 = vld [vmem:[%s1700 + $0x4c] sm:$0xf]
      %v1721 = vld [vmem:[%s1700 + $0x50] sm:$0xf]
      %v1722 = vld [vmem:[%s1700 + $0x54] sm:$0xf]
      %v1723 = vld [vmem:[%s1700 + $0x58] sm:$0xf]
      %v1724 = vld [vmem:[%s1700 + $0x5c] sm:$0xf]
      %v1725 = vld [vmem:[%s1700 + $0x60] sm:$0xf]
      %v1726 = vld [vmem:[%s1700 + $0x64] sm:$0xf]
      %v1727 = vld [vmem:[%s1700 + $0x68] sm:$0xf]
      %v1728 = vld [vmem:[%s1700 + $0x6c] sm:$0xf]
      %v1729 = vld [vmem:[%s1700 + $0x70] sm:$0xf]
      %v1730 = vld [vmem:[%s1700 + $0x74] sm:$0xf]
      %v1731 = vld [vmem:[%s1700 + $0x78] sm:$0xf]
      %v1732 = vld [vmem:[%s1700 + $0x7c] sm:$0xf]
      %v1733 = vld [vmem:[%s1700 + $0x80] sm:$0xf]
      %v1734 = vld [vmem:[%s1700 + $0x84] sm:$0xf]
      %v1735 = vld [vmem:[%s1700 + $0x88] sm:$0xf]
      %v1736 = vld [vmem:[%s1700 + $0x8c] sm:$0xf]
      %v1737 = vld [vmem:[%s1700 + $0x90] sm:$0xf]
      %v1738 = vld [vmem:[%s1700 + $0x94] sm:$0xf]
      %v1739 = vld [vmem:[%s1700 + $0x98] sm:$0xf]
      %v1740 = vld [vmem:[%s1700 + $0x9c] sm:$0xf]
      %v1741 = vld [vmem:[%s1700 + $0xa0] sm:$0xf]
      %v1742 = vld [vmem:[%s1700 + $0xa4] sm:$0xf]
      %v1743 = vld [vmem:[%s1700 + $0xa8] sm:$0xf]
      %v1744 = vld [vmem:[%s1700 + $0xac] sm:$0xf]
      %v1745 = vld [vmem:[%s1700 + $0xb0] sm:$0xf]
      %v1746 = vld [vmem:[%s1700 + $0xb4] sm:$0xf]
      %v1747 = vld [vmem:[%s1700 + $0xb8] sm:$0xf]
      %v1748 = vld [vmem:[%s1700 + $0xbc] sm:$0xf]
      %v1749 = vpack.c.b16 %v1574, %v1572
      %v1750 = vpack.c.b16 %v1686, %v1684
      %v1751 = vpack.c.b16 %v1687, %v1685
      %v1752 = vpack.c.b16 %v1578, %v1576
      %v1753 = vpack.c.b16 %v1690, %v1688
      %v1754 = vpack.c.b16 %v1691, %v1689
      %v1755 = vpack.c.b16 %v1582, %v1580
      %v1756 = vpack.c.b16 %v1694, %v1692
      %v1757 = vpack.c.b16 %v1695, %v1693
      %v1758 = vpack.c.b16 %v1586, %v1584
      %v1759 = vpack.c.b16 %v1698, %v1696
      %v1760 = vpack.c.b16 %v1699, %v1697
      %v1821 = vunpack.c.l.b16 %v1701
      %v1822 = vunpack.c.l.b16 %v1702
      %v1823 = vunpack.c.l.b16 %v1703
      %v1824 = vunpack.c.l.b16 %v1704
      %v1825 = vunpack.c.l.b16 %v1705
      %v1826 = vunpack.c.l.b16 %v1706
      %v1827 = vunpack.c.l.b16 %v1707
      %v1828 = vunpack.c.l.b16 %v1708
      %v1829 = vunpack.c.l.b16 %v1709
      %v1830 = vunpack.c.l.b16 %v1710
      %v1831 = vunpack.c.l.b16 %v1711
      %v1832 = vunpack.c.l.b16 %v1712
      %v1833 = vunpack.c.l.b16 %v1713
      %v1834 = vunpack.c.l.b16 %v1714
      %v1835 = vunpack.c.l.b16 %v1715
      %v1836 = vunpack.c.l.b16 %v1716
      %v1837 = vunpack.c.l.b16 %v1717
      %v1838 = vunpack.c.l.b16 %v1718
      %v1839 = vunpack.c.l.b16 %v1719
      %v1840 = vunpack.c.l.b16 %v1720
      %v1841 = vunpack.c.l.b16 %v1721
      %v1842 = vunpack.c.l.b16 %v1722
      %v1843 = vunpack.c.l.b16 %v1723
      %v1844 = vunpack.c.l.b16 %v1724
      %v1845 = vunpack.c.l.b16 %v1725
      %v1846 = vunpack.c.l.b16 %v1726
      %v1847 = vunpack.c.l.b16 %v1727
      %v1848 = vunpack.c.l.b16 %v1728
      %v1849 = vunpack.c.l.b16 %v1729
      %v1850 = vunpack.c.l.b16 %v1730
      %v1851 = vunpack.c.l.b16 %v1731
      %v1852 = vunpack.c.l.b16 %v1732
      %v1853 = vunpack.c.l.b16 %v1733
      %v1854 = vunpack.c.l.b16 %v1734
      %v1855 = vunpack.c.l.b16 %v1735
      %v1856 = vunpack.c.l.b16 %v1736
      %v1857 = vunpack.c.l.b16 %v1737
      %v1858 = vunpack.c.l.b16 %v1738
      %v1859 = vunpack.c.l.b16 %v1739
      %v1860 = vunpack.c.l.b16 %v1740
      %v1861 = vunpack.c.l.b16 %v1741
      %v1862 = vunpack.c.l.b16 %v1742
      %v1863 = vunpack.c.l.b16 %v1743
      %v1864 = vunpack.c.l.b16 %v1744
      %v1865 = vunpack.c.l.b16 %v1745
      %v1866 = vunpack.c.l.b16 %v1746
      %v1867 = vunpack.c.l.b16 %v1747
      %v1868 = vunpack.c.l.b16 %v1748
      %v1869 = vpack.c.b16 %v1822, %v1821
      %v1870 = vpack.c.b16 %v1824, %v1823
      %v1871 = vpack.c.b16 %v1826, %v1825
      %v1872 = vpack.c.b16 %v1828, %v1827
      %v1873 = vpack.c.b16 %v1830, %v1829
      %v1874 = vpack.c.b16 %v1832, %v1831
      %v1875 = vpack.c.b16 %v1834, %v1833
      %v1876 = vpack.c.b16 %v1836, %v1835
      %v1877 = vpack.c.b16 %v1838, %v1837
      %v1878 = vpack.c.b16 %v1840, %v1839
      %v1879 = vpack.c.b16 %v1842, %v1841
      %v1880 = vpack.c.b16 %v1844, %v1843
      %v1881 = vpack.c.b16 %v1846, %v1845
      %v1882 = vpack.c.b16 %v1848, %v1847
      %v1883 = vpack.c.b16 %v1850, %v1849
      %v1884 = vpack.c.b16 %v1852, %v1851
      %v1885 = vpack.c.b16 %v1854, %v1853
      %v1886 = vpack.c.b16 %v1856, %v1855
      %v1887 = vpack.c.b16 %v1858, %v1857
      %v1888 = vpack.c.b16 %v1860, %v1859
      %v1889 = vpack.c.b16 %v1862, %v1861
      %v1890 = vpack.c.b16 %v1864, %v1863
      %v1891 = vpack.c.b16 %v1866, %v1865
      %v1892 = vpack.c.b16 %v1868, %v1867
      %1917 = vmatprep.subr.bf16.mxu0 0
      %1918 = vmatpush1.bf16.msra.mxu0 %v1869
      %1919 = vmatprep.subr.bf16.mxu0 0
      %1920 = vmatpush1.bf16.msra.mxu0 %v1870
      %1921 = vmatprep.subr.bf16.mxu0 0
      %1922 = vmatpush1.bf16.msra.mxu0 %v1871
      %1923 = vmatprep.subr.bf16.mxu0 0
      %1924 = vmatpush1.bf16.msra.mxu0 %v1872
      %1925 = vmatprep.subr.bf16.mxu0 0
      %1926 = vmatpush1.bf16.msra.mxu0 %v1873
      %1927 = vmatprep.subr.bf16.mxu0 0
      %1928 = vmatpush1.bf16.msra.mxu0 %v1874
      %1929 = vmatprep.subr.bf16.mxu0 0
      %1930 = vmatpush1.bf16.msra.mxu0 %v1875
      %1931 = vmatprep.subr.bf16.mxu0 0
      %1932 = vmatpush1.bf16.msra.mxu0 %v1876
      %1933 = vmatprep.subr.bf16.mxu0 0
      %1934 = vmatpush1.bf16.msra.mxu0 %v1877
      %1935 = vmatprep.subr.bf16.mxu0 0
      %1936 = vmatpush1.bf16.msra.mxu0 %v1878
      %1937 = vmatprep.subr.bf16.mxu0 0
      %1938 = vmatpush1.bf16.msra.mxu0 %v1879
      %1939 = vmatprep.subr.bf16.mxu0 0
      %1940 = vmatpush1.bf16.msra.mxu0 %v1880
      %1941 = vmatprep.subr.bf16.mxu0 0
      %1942 = vmatpush1.bf16.msra.mxu0 %v1881
      %1943 = vmatprep.subr.bf16.mxu0 0
      %1944 = vmatpush1.bf16.msra.mxu0 %v1882
      %1945 = vmatprep.subr.bf16.mxu0 0
      %1946 = vmatpush1.bf16.msra.mxu0 %v1883
      %1947 = vmatprep.subr.bf16.mxu0 0
      %1948 = vmatpush1.bf16.msra.mxu0 %v1884
      %1949 = vmatprep.mubr.bf16.mxu0 %v1750
      %1950 = vmatmul.mubr.bf16.gmra.mrb[0].mxu0 %v1749
      %v1951 = vpop.f32.mrb[0].mxu0
      %v1952 = vadd.f32 0.0, %v1951
      %v1953 = vpop.f32.mrb[0].mxu0
      %v1954 = vpop.f32.mrb[0].mxu0
      %v1955 = vadd.f32 0.0, %v1954
      %v1956 = vpop.f32.mrb[0].mxu0
      %1957 = vmatprep.mubr.bf16.mxu0 %v1753
      %1958 = vmatmul.mubr.bf16.gmra.mrb[0].mxu0 %v1752
      %v1959 = vpop.f32.mrb[0].mxu0
      %v1960 = vadd.f32 0.0, %v1959
      %v1961 = vpop.f32.mrb[0].mxu0
      %v1962 = vpop.f32.mrb[0].mxu0
      %v1963 = vadd.f32 0.0, %v1962
      %v1964 = vpop.f32.mrb[0].mxu0
      %1965 = vmatprep.mubr.bf16.mxu0 %v1756
      %1966 = vmatmul.mubr.bf16.gmra.mrb[0].mxu0 %v1755
      %v1967 = vpop.f32.mrb[0].mxu0
      %v1968 = vadd.f32 0.0, %v1967
      %v1969 = vpop.f32.mrb[0].mxu0
      %v1970 = vpop.f32.mrb[0].mxu0
      %v1971 = vadd.f32 0.0, %v1970
      %v1972 = vpop.f32.mrb[0].mxu0
      %1973 = vmatprep.mubr.bf16.mxu0 %v1759
      %1974 = vmatmul.mubr.bf16.gmra.mrb[0].mxu0 %v1758
      %v1975 = vpop.f32.mrb[0].mxu0
      %v1976 = vadd.f32 0.0, %v1975
      %v1977 = vpop.f32.mrb[0].mxu0
      %v1978 = vpop.f32.mrb[0].mxu0
      %v1979 = vadd.f32 0.0, %v1978
      %v1980 = vpop.f32.mrb[0].mxu0
      %1981 = vdwg.mxu0
      %1982 = vmatprep.subr.bf16.mxu0 0
      %1983 = vmatpush1.bf16.msra.mxu0 %v1885
      %1984 = vmatprep.subr.bf16.mxu0 0
      %1985 = vmatpush1.bf16.msra.mxu0 %v1886
      %1986 = vmatprep.subr.bf16.mxu0 0
      %1987 = vmatpush1.bf16.msra.mxu0 %v1887
      %1988 = vmatprep.subr.bf16.mxu0 0
      %1989 = vmatpush1.bf16.msra.mxu0 %v1888
      %1990 = vmatprep.subr.bf16.mxu0 0
      %1991 = vmatpush1.bf16.msra.mxu0 %v1889
      %1992 = vmatprep.subr.bf16.mxu0 0
      %1993 = vmatpush1.bf16.msra.mxu0 %v1890
      %1994 = vmatprep.subr.bf16.mxu0 0
      %1995 = vmatpush1.bf16.msra.mxu0 %v1891
      %1996 = vmatprep.subr.bf16.mxu0 0
      %1997 = vmatpush1.bf16.msra.mxu0 %v1892
      %1998 = vmatprep.subr.bf16.mxu0 0
      %1999 = vmatpush1.bf16.msra.mxu0 0
      %2000 = vmatprep.subr.bf16.mxu0 0
      %2001 = vmatpush1.bf16.msra.mxu0 0
      %2002 = vmatprep.subr.bf16.mxu0 0
      %2003 = vmatpush1.bf16.msra.mxu0 0
      %2004 = vmatprep.subr.bf16.mxu0 0
      %2005 = vmatpush1.bf16.msra.mxu0 0
      %2006 = vmatprep.subr.bf16.mxu0 0
      %2007 = vmatpush1.bf16.msra.mxu0 0
      %2008 = vmatprep.subr.bf16.mxu0 0
      %2009 = vmatpush1.bf16.msra.mxu0 0
      %2010 = vmatprep.subr.bf16.mxu0 0
      %2011 = vmatpush1.bf16.msra.mxu0 0
      %2012 = vmatprep.subr.bf16.mxu0 0
      %2013 = vmatpush1.bf16.msra.mxu0 0
      %2014 = vmatprep.mubr.bf16.mxu0 0
      %2015 = vmatmul.mubr.bf16.gmra.mrb[0].mxu0 %v1751
      %v2016 = vpop.f32.mrb[0].mxu0
      %v2017 = vadd.f32 %v1952, %v2016
      %v2018 = vpop.f32.mrb[0].mxu0
      %v2019 = vpop.f32.mrb[0].mxu0
      %v2020 = vadd.f32 %v1955, %v2019
      %v2021 = vpop.f32.mrb[0].mxu0
      %2022 = vmatprep.mubr.bf16.mxu0 0
      %2023 = vmatmul.mubr.bf16.gmra.mrb[0].mxu0 %v1754
      %v2024 = vpop.f32.mrb[0].mxu0
      %v2025 = vadd.f32 %v1960, %v2024
      %v2026 = vpop.f32.mrb[0].mxu0
      %v2027 = vpop.f32.mrb[0].mxu0
      %v2028 = vadd.f32 %v1963, %v2027
      %v2029 = vpop.f32.mrb[0].mxu0
      %2030 = vmatprep.mubr.bf16.mxu0 0
      %2031 = vmatmul.mubr.bf16.gmra.mrb[0].mxu0 %v1757
      %v2032 = vpop.f32.mrb[0].mxu0
      %v2033 = vadd.f32 %v1968, %v2032
      %v2034 = vpop.f32.mrb[0].mxu0
      %v2035 = vpop.f32.mrb[0].mxu0
      %v2036 = vadd.f32 %v1971, %v2035
      %v2037 = vpop.f32.mrb[0].mxu0
      %2038 = vmatprep.mubr.bf16.mxu0 0
      %2039 = vmatmul.mubr.bf16.gmra.mrb[0].mxu0 %v1760
      %v2040 = vpop.f32.mrb[0].mxu0
      %v2041 = vadd.f32 %v1976, %v2040
      %v2042 = vpop.f32.mrb[0].mxu0
      %v2043 = vpop.f32.mrb[0].mxu0
      %v2044 = vadd.f32 %v1979, %v2043
      %v2045 = vpop.f32.mrb[0].mxu0
      %2046 = vdwg.mxu0
      %v2047 = vpack.c.b16 %v1358, %v1356
      %v2048 = vpack.c.b16 %v1470, %v1468
      %v2049 = vpack.c.b16 %v1471, %v1469
      %v2050 = vpack.c.b16 %v1362, %v1360
      %v2051 = vpack.c.b16 %v1474, %v1472
      %v2052 = vpack.c.b16 %v1475, %v1473
      %v2053 = vpack.c.b16 %v1366, %v1364
      %v2054 = vpack.c.b16 %v1478, %v1476
      %v2055 = vpack.c.b16 %v1479, %v1477
      %v2056 = vpack.c.b16 %v1370, %v1368
      %v2057 = vpack.c.b16 %v1482, %v1480
      %v2058 = vpack.c.b16 %v1483, %v1481
      %v2119 = vunpack.c.l.b16 %v1484
      %v2120 = vunpack.c.l.b16 %v1485
      %v2121 = vunpack.c.l.b16 %v1486
      %v2122 = vunpack.c.l.b16 %v1487
      %v2123 = vunpack.c.l.b16 %v1488
      %v2124 = vunpack.c.l.b16 %v1489
      %v2125 = vunpack.c.l.b16 %v1490
      %v2126 = vunpack.c.l.b16 %v1491
      %v2127 = vunpack.c.l.b16 %v1492
      %v2128 = vunpack.c.l.b16 %v1493
      %v2129 = vunpack.c.l.b16 %v1494
      %v2130 = vunpack.c.l.b16 %v1495
      %v2131 = vunpack.c.l.b16 %v1496
      %v2132 = vunpack.c.l.b16 %v1497
      %v2133 = vunpack.c.l.b16 %v1498
      %v2134 = vunpack.c.l.b16 %v1499
      %v2135 = vunpack.c.l.b16 %v1500
      %v2136 = vunpack.c.l.b16 %v1501
      %v2137 = vunpack.c.l.b16 %v1502
      %v2138 = vunpack.c.l.b16 %v1503
      %v2139 = vunpack.c.l.b16 %v1504
      %v2140 = vunpack.c.l.b16 %v1505
      %v2141 = vunpack.c.l.b16 %v1506
      %v2142 = vunpack.c.l.b16 %v1507
      %v2143 = vunpack.c.l.b16 %v1508
      %v2144 = vunpack.c.l.b16 %v1509
      %v2145 = vunpack.c.l.b16 %v1510
      %v2146 = vunpack.c.l.b16 %v1511
      %v2147 = vunpack.c.l.b16 %v1512
      %v2148 = vunpack.c.l.b16 %v1513
      %v2149 = vunpack.c.l.b16 %v1514
      %v2150 = vunpack.c.l.b16 %v1515
      %v2151 = vunpack.c.l.b16 %v1516
      %v2152 = vunpack.c.l.b16 %v1517
      %v2153 = vunpack.c.l.b16 %v1518
      %v2154 = vunpack.c.l.b16 %v1519
      %v2155 = vunpack.c.l.b16 %v1520
      %v2156 = vunpack.c.l.b16 %v1521
      %v2157 = vunpack.c.l.b16 %v1522
      %v2158 = vunpack.c.l.b16 %v1523
      %v2159 = vunpack.c.l.b16 %v1524
      %v2160 = vunpack.c.l.b16 %v1525
      %v2161 = vunpack.c.l.b16 %v1526
      %v2162 = vunpack.c.l.b16 %v1527
      %v2163 = vunpack.c.l.b16 %v1528
      %v2164 = vunpack.c.l.b16 %v1529
      %v2165 = vunpack.c.l.b16 %v1530
      %v2166 = vunpack.c.l.b16 %v1531
      %v2167 = vpack.c.b16 %v2120, %v2119
      %v2168 = vpack.c.b16 %v2122, %v2121
      %v2169 = vpack.c.b16 %v2124, %v2123
      %v2170 = vpack.c.b16 %v2126, %v2125
      %v2171 = vpack.c.b16 %v2128, %v2127
      %v2172 = vpack.c.b16 %v2130, %v2129
      %v2173 = vpack.c.b16 %v2132, %v2131
      %v2174 = vpack.c.b16 %v2134, %v2133
      %v2175 = vpack.c.b16 %v2136, %v2135
      %v2176 = vpack.c.b16 %v2138, %v2137
      %v2177 = vpack.c.b16 %v2140, %v2139
      %v2178 = vpack.c.b16 %v2142, %v2141
      %v2179 = vpack.c.b16 %v2144, %v2143
      %v2180 = vpack.c.b16 %v2146, %v2145
      %v2181 = vpack.c.b16 %v2148, %v2147
      %v2182 = vpack.c.b16 %v2150, %v2149
      %v2183 = vpack.c.b16 %v2152, %v2151
      %v2184 = vpack.c.b16 %v2154, %v2153
      %v2185 = vpack.c.b16 %v2156, %v2155
      %v2186 = vpack.c.b16 %v2158, %v2157
      %v2187 = vpack.c.b16 %v2160, %v2159
      %v2188 = vpack.c.b16 %v2162, %v2161
      %v2189 = vpack.c.b16 %v2164, %v2163
      %v2190 = vpack.c.b16 %v2166, %v2165
      %2215 = vmatprep.subr.bf16.mxu0 0
      %2216 = vmatpush1.bf16.msra.mxu0 %v2167
      %2217 = vmatprep.subr.bf16.mxu0 0
      %2218 = vmatpush1.bf16.msra.mxu0 %v2168
      %2219 = vmatprep.subr.bf16.mxu0 0
      %2220 = vmatpush1.bf16.msra.mxu0 %v2169
      %2221 = vmatprep.subr.bf16.mxu0 0
      %2222 = vmatpush1.bf16.msra.mxu0 %v2170
      %2223 = vmatprep.subr.bf16.mxu0 0
      %2224 = vmatpush1.bf16.msra.mxu0 %v2171
      %2225 = vmatprep.subr.bf16.mxu0 0
      %2226 = vmatpush1.bf16.msra.mxu0 %v2172
      %2227 = vmatprep.subr.bf16.mxu0 0
      %2228 = vmatpush1.bf16.msra.mxu0 %v2173
      %2229 = vmatprep.subr.bf16.mxu0 0
      %2230 = vmatpush1.bf16.msra.mxu0 %v2174
      %2231 = vmatprep.subr.bf16.mxu0 0
      %2232 = vmatpush1.bf16.msra.mxu0 %v2175
      %2233 = vmatprep.subr.bf16.mxu0 0
      %2234 = vmatpush1.bf16.msra.mxu0 %v2176
      %2235 = vmatprep.subr.bf16.mxu0 0
      %2236 = vmatpush1.bf16.msra.mxu0 %v2177
      %2237 = vmatprep.subr.bf16.mxu0 0
      %2238 = vmatpush1.bf16.msra.mxu0 %v2178
      %2239 = vmatprep.subr.bf16.mxu0 0
      %2240 = vmatpush1.bf16.msra.mxu0 %v2179
      %2241 = vmatprep.subr.bf16.mxu0 0
      %2242 = vmatpush1.bf16.msra.mxu0 %v2180
      %2243 = vmatprep.subr.bf16.mxu0 0
      %2244 = vmatpush1.bf16.msra.mxu0 %v2181
      %2245 = vmatprep.subr.bf16.mxu0 0
      %2246 = vmatpush1.bf16.msra.mxu0 %v2182
      %2247 = vmatprep.mubr.bf16.mxu0 %v2048
      %2248 = vmatmul.mubr.bf16.gmra.mrb[0].mxu0 %v2047
      %v2249 = vpop.f32.mrb[0].mxu0
      %v2250 = vadd.f32 %v2017, %v2249
      %v2251 = vpop.f32.mrb[0].mxu0
      %v2252 = vpop.f32.mrb[0].mxu0
      %v2253 = vadd.f32 %v2020, %v2252
      %v2254 = vpop.f32.mrb[0].mxu0
      %2255 = vmatprep.mubr.bf16.mxu0 %v2051
      %2256 = vmatmul.mubr.bf16.gmra.mrb[0].mxu0 %v2050
      %v2257 = vpop.f32.mrb[0].mxu0
      %v2258 = vadd.f32 %v2025, %v2257
      %v2259 = vpop.f32.mrb[0].mxu0
      %v2260 = vpop.f32.mrb[0].mxu0
      %v2261 = vadd.f32 %v2028, %v2260
      %v2262 = vpop.f32.mrb[0].mxu0
      %2263 = vmatprep.mubr.bf16.mxu0 %v2054
      %2264 = vmatmul.mubr.bf16.gmra.mrb[0].mxu0 %v2053
      %v2265 = vpop.f32.mrb[0].mxu0
      %v2266 = vadd.f32 %v2033, %v2265
      %v2267 = vpop.f32.mrb[0].mxu0
      %v2268 = vpop.f32.mrb[0].mxu0
      %v2269 = vadd.f32 %v2036, %v2268
      %v2270 = vpop.f32.mrb[0].mxu0
      %2271 = vmatprep.mubr.bf16.mxu0 %v2057
      %2272 = vmatmul.mubr.bf16.gmra.mrb[0].mxu0 %v2056
      %v2273 = vpop.f32.mrb[0].mxu0
      %v2274 = vadd.f32 %v2041, %v2273
      %v2275 = vpop.f32.mrb[0].mxu0
      %v2276 = vpop.f32.mrb[0].mxu0
      %v2277 = vadd.f32 %v2044, %v2276
      %v2278 = vpop.f32.mrb[0].mxu0
      %2279 = vdwg.mxu0
      %2280 = vmatprep.subr.bf16.mxu0 0
      %2281 = vmatpush1.bf16.msra.mxu0 %v2183
      %2282 = vmatprep.subr.bf16.mxu0 0
      %2283 = vmatpush1.bf16.msra.mxu0 %v2184
      %2284 = vmatprep.subr.bf16.mxu0 0
      %2285 = vmatpush1.bf16.msra.mxu0 %v2185
      %2286 = vmatprep.subr.bf16.mxu0 0
      %2287 = vmatpush1.bf16.msra.mxu0 %v2186
      %2288 = vmatprep.subr.bf16.mxu0 0
      %2289 = vmatpush1.bf16.msra.mxu0 %v2187
      %2290 = vmatprep.subr.bf16.mxu0 0
      %2291 = vmatpush1.bf16.msra.mxu0 %v2188
      %2292 = vmatprep.subr.bf16.mxu0 0
      %2293 = vmatpush1.bf16.msra.mxu0 %v2189
      %2294 = vmatprep.subr.bf16.mxu0 0
      %2295 = vmatpush1.bf16.msra.mxu0 %v2190
      %2296 = vmatprep.subr.bf16.mxu0 0
      %2297 = vmatpush1.bf16.msra.mxu0 0
      %2298 = vmatprep.subr.bf16.mxu0 0
      %2299 = vmatpush1.bf16.msra.mxu0 0
      %2300 = vmatprep.subr.bf16.mxu0 0
      %2301 = vmatpush1.bf16.msra.mxu0 0
      %2302 = vmatprep.subr.bf16.mxu0 0
      %2303 = vmatpush1.bf16.msra.mxu0 0
      %2304 = vmatprep.subr.bf16.mxu0 0
      %2305 = vmatpush1.bf16.msra.mxu0 0
      %2306 = vmatprep.subr.bf16.mxu0 0
      %2307 = vmatpush1.bf16.msra.mxu0 0
      %2308 = vmatprep.subr.bf16.mxu0 0
      %2309 = vmatpush1.bf16.msra.mxu0 0
      %2310 = vmatprep.subr.bf16.mxu0 0
      %2311 = vmatpush1.bf16.msra.mxu0 0
      %2312 = vmatprep.mubr.bf16.mxu0 0
      %2313 = vmatmul.mubr.bf16.gmra.mrb[0].mxu0 %v2049
      %v2314 = vpop.f32.mrb[0].mxu0
      %v2315 = vadd.f32 %v2250, %v2314
      %v2316 = vpop.f32.mrb[0].mxu0
      %v2317 = vpop.f32.mrb[0].mxu0
      %v2318 = vadd.f32 %v2253, %v2317
      %v2319 = vpop.f32.mrb[0].mxu0
      %2320 = vmatprep.mubr.bf16.mxu0 0
      %2321 = vmatmul.mubr.bf16.gmra.mrb[0].mxu0 %v2052
      %v2322 = vpop.f32.mrb[0].mxu0
      %v2323 = vadd.f32 %v2258, %v2322
      %v2324 = vpop.f32.mrb[0].mxu0
      %v2325 = vpop.f32.mrb[0].mxu0
      %v2326 = vadd.f32 %v2261, %v2325
      %v2327 = vpop.f32.mrb[0].mxu0
      %2328 = vmatprep.mubr.bf16.mxu0 0
      %2329 = vmatmul.mubr.bf16.gmra.mrb[0].mxu0 %v2055
      %v2330 = vpop.f32.mrb[0].mxu0
      %v2331 = vadd.f32 %v2266, %v2330
      %v2332 = vpop.f32.mrb[0].mxu0
      %v2333 = vpop.f32.mrb[0].mxu0
      %v2334 = vadd.f32 %v2269, %v2333
      %v2335 = vpop.f32.mrb[0].mxu0
      %2336 = vmatprep.mubr.bf16.mxu0 0
      %2337 = vmatmul.mubr.bf16.gmra.mrb[0].mxu0 %v2058
      %v2338 = vpop.f32.mrb[0].mxu0
      %v2339 = vadd.f32 %v2274, %v2338
      %v2340 = vpop.f32.mrb[0].mxu0
      %v2341 = vpop.f32.mrb[0].mxu0
      %v2342 = vadd.f32 %v2277, %v2341
      %v2343 = vpop.f32.mrb[0].mxu0
      %2344 = vdwg.mxu0
      %s2345 = scalar_lea.vmem [#allocation2], 16
      %v2346 = vld [vmem:[%s2345] sm:$0xf]
      %v2347 = vld [vmem:[%s2345 + $0x8] sm:$0xf]
      %v2348 = vld [vmem:[%s2345 + $0x10] sm:$0xf]
      %v2349 = vld [vmem:[%s2345 + $0x18] sm:$0xf]
      %v2350 = vld [vmem:[%s2345 + $0x20] sm:$0xf]
      %v2351 = vld [vmem:[%s2345 + $0x28] sm:$0xf]
      %v2352 = vld [vmem:[%s2345 + $0x30] sm:$0xf]
      %v2353 = vld [vmem:[%s2345 + $0x38] sm:$0xf]
      %v2354 = vld [vmem:[%s2345 + $0x4] sm:$0x1]
      %v2355 = vld [vmem:[%s2345 + $0xc] sm:$0x1]
      %v2356 = vld [vmem:[%s2345 + $0x14] sm:$0x1]
      %v2357 = vld [vmem:[%s2345 + $0x1c] sm:$0x1]
      %v2358 = vld [vmem:[%s2345 + $0x24] sm:$0x1]
      %v2359 = vld [vmem:[%s2345 + $0x2c] sm:$0x1]
      %v2360 = vld [vmem:[%s2345 + $0x34] sm:$0x1]
      %v2361 = vld [vmem:[%s2345 + $0x3c] sm:$0x1]
      %v2362 = vld [vmem:[%s2345] sm:$0xe]
      %v2363 = vld [vmem:[%s2345 + $0x8] sm:$0xe]
      %v2364 = vld [vmem:[%s2345 + $0x10] sm:$0xe]
      %v2365 = vld [vmem:[%s2345 + $0x18] sm:$0xe]
      %v2366 = vld [vmem:[%s2345 + $0x20] sm:$0xe]
      %v2367 = vld [vmem:[%s2345 + $0x28] sm:$0xe]
      %v2368 = vld [vmem:[%s2345 + $0x30] sm:$0xe]
      %v2369 = vld [vmem:[%s2345 + $0x38] sm:$0xe]
      %v2386 = vunpack.c.l.b16 %v2346
      %v2387 = vunpack.c.l.b16 %v2354
      %v2388 = vunpack.c.l.b16 %v2347
      %v2389 = vunpack.c.l.b16 %v2355
      %v2390 = vunpack.c.l.b16 %v2348
      %v2391 = vunpack.c.l.b16 %v2356
      %v2392 = vunpack.c.l.b16 %v2349
      %v2393 = vunpack.c.l.b16 %v2357
      %v2394 = vunpack.c.l.b16 %v2350
      %v2395 = vunpack.c.l.b16 %v2358
      %v2396 = vunpack.c.l.b16 %v2351
      %v2397 = vunpack.c.l.b16 %v2359
      %v2398 = vunpack.c.l.b16 %v2352
      %v2399 = vunpack.c.l.b16 %v2360
      %v2400 = vunpack.c.l.b16 %v2353
      %v2401 = vunpack.c.l.b16 %v2361
      %v2402 = vpack.c.b16 %v2387, %v2386
      %v2403 = vpack.c.b16 %v2389, %v2388
      %v2404 = vpack.c.b16 %v2391, %v2390
      %v2405 = vpack.c.b16 %v2393, %v2392
      %v2406 = vpack.c.b16 %v2395, %v2394
      %v2407 = vpack.c.b16 %v2397, %v2396
      %v2408 = vpack.c.b16 %v2399, %v2398
      %v2409 = vpack.c.b16 %v2401, %v2400
      %v2411 = vshrl.u32 %v2402, 16
      %v2413 = vshll.u32 %v2402, 16
      %v2415 = vrot.slane %v2413, 1
      %v2416 = vor.u32 %v2411, %v2415
      %v2418 = vshrl.u32 %v2403, 16
      %v2420 = vshll.u32 %v2403, 16
      %v2422 = vrot.slane %v2420, 1
      %v2423 = vor.u32 %v2418, %v2422
      %v2425 = vshrl.u32 %v2404, 16
      %v2427 = vshll.u32 %v2404, 16
      %v2429 = vrot.slane %v2427, 1
      %v2430 = vor.u32 %v2425, %v2429
      %v2432 = vshrl.u32 %v2405, 16
      %v2434 = vshll.u32 %v2405, 16
      %v2436 = vrot.slane %v2434, 1
      %v2437 = vor.u32 %v2432, %v2436
      %v2439 = vshrl.u32 %v2406, 16
      %v2441 = vshll.u32 %v2406, 16
      %v2443 = vrot.slane %v2441, 1
      %v2444 = vor.u32 %v2439, %v2443
      %v2446 = vshrl.u32 %v2407, 16
      %v2448 = vshll.u32 %v2407, 16
      %v2450 = vrot.slane %v2448, 1
      %v2451 = vor.u32 %v2446, %v2450
      %v2453 = vshrl.u32 %v2408, 16
      %v2455 = vshll.u32 %v2408, 16
      %v2457 = vrot.slane %v2455, 1
      %v2458 = vor.u32 %v2453, %v2457
      %v2460 = vshrl.u32 %v2409, 16
      %v2462 = vshll.u32 %v2409, 16
      %v2464 = vrot.slane %v2462, 1
      %v2465 = vor.u32 %v2460, %v2464
      %v2474 = vunpack.c.l.b16 %v2362
      %v2475 = vunpack.c.l.b16 %v2363
      %v2476 = vunpack.c.l.b16 %v2364
      %v2477 = vunpack.c.l.b16 %v2365
      %v2478 = vunpack.c.l.b16 %v2366
      %v2479 = vunpack.c.l.b16 %v2367
      %v2480 = vunpack.c.l.b16 %v2368
      %v2481 = vunpack.c.l.b16 %v2369
      %v2482 = vpack.c.b16 %v2387, %v2474
      %v2483 = vpack.c.b16 %v2389, %v2475
      %v2484 = vpack.c.b16 %v2391, %v2476
      %v2485 = vpack.c.b16 %v2393, %v2477
      %v2486 = vpack.c.b16 %v2395, %v2478
      %v2487 = vpack.c.b16 %v2397, %v2479
      %v2488 = vpack.c.b16 %v2399, %v2480
      %v2489 = vpack.c.b16 %v2401, %v2481
      %v2490 = vrot.slane %v2482, 1
      %v2491 = vrot.slane %v2483, 1
      %v2492 = vrot.slane %v2484, 1
      %v2493 = vrot.slane %v2485, 1
      %v2494 = vrot.slane %v2486, 1
      %v2495 = vrot.slane %v2487, 1
      %v2496 = vrot.slane %v2488, 1
      %v2497 = vrot.slane %v2489, 1
      %v2498 = vunpack.c.l.b16 %v2416
      %v2499 = vunpack.c.l.b16 %v2490
      %v2500 = vunpack.c.l.b16 %v2423
      %v2501 = vunpack.c.l.b16 %v2491
      %v2502 = vunpack.c.l.b16 %v2430
      %v2503 = vunpack.c.l.b16 %v2492
      %v2504 = vunpack.c.l.b16 %v2437
      %v2505 = vunpack.c.l.b16 %v2493
      %v2506 = vunpack.c.l.b16 %v2444
      %v2507 = vunpack.c.l.b16 %v2494
      %v2508 = vunpack.c.l.b16 %v2451
      %v2509 = vunpack.c.l.b16 %v2495
      %v2510 = vunpack.c.l.b16 %v2458
      %v2511 = vunpack.c.l.b16 %v2496
      %v2512 = vunpack.c.l.b16 %v2465
      %v2513 = vunpack.c.l.b16 %v2497
      %s2514 = scalar_lea.vmem %s2, 384
      %v2515 = vld [vmem:[%s2514] sm:$0xf]
      %v2516 = vld [vmem:[%s2514 + $0x4] sm:$0xf]
      %v2517 = vld [vmem:[%s2514 + $0x8] sm:$0xf]
      %v2518 = vld [vmem:[%s2514 + $0xc] sm:$0xf]
      %v2519 = vld [vmem:[%s2514 + $0x10] sm:$0xf]
      %v2520 = vld [vmem:[%s2514 + $0x14] sm:$0xf]
      %v2521 = vld [vmem:[%s2514 + $0x18] sm:$0xf]
      %v2522 = vld [vmem:[%s2514 + $0x1c] sm:$0xf]
      %v2523 = vld [vmem:[%s2514 + $0x20] sm:$0xf]
      %v2524 = vld [vmem:[%s2514 + $0x24] sm:$0xf]
      %v2525 = vld [vmem:[%s2514 + $0x28] sm:$0xf]
      %v2526 = vld [vmem:[%s2514 + $0x2c] sm:$0xf]
      %v2527 = vld [vmem:[%s2514 + $0x30] sm:$0xf]
      %v2528 = vld [vmem:[%s2514 + $0x34] sm:$0xf]
      %v2529 = vld [vmem:[%s2514 + $0x38] sm:$0xf]
      %v2530 = vld [vmem:[%s2514 + $0x3c] sm:$0xf]
      %v2531 = vld [vmem:[%s2514 + $0x40] sm:$0xf]
      %v2532 = vld [vmem:[%s2514 + $0x44] sm:$0xf]
      %v2533 = vld [vmem:[%s2514 + $0x48] sm:$0xf]
      %v2534 = vld [vmem:[%s2514 + $0x4c] sm:$0xf]
      %v2535 = vld [vmem:[%s2514 + $0x50] sm:$0xf]
      %v2536 = vld [vmem:[%s2514 + $0x54] sm:$0xf]
      %v2537 = vld [vmem:[%s2514 + $0x58] sm:$0xf]
      %v2538 = vld [vmem:[%s2514 + $0x5c] sm:$0xf]
      %v2539 = vld [vmem:[%s2514 + $0x60] sm:$0xf]
      %v2540 = vld [vmem:[%s2514 + $0x64] sm:$0xf]
      %v2541 = vld [vmem:[%s2514 + $0x68] sm:$0xf]
      %v2542 = vld [vmem:[%s2514 + $0x6c] sm:$0xf]
      %v2543 = vld [vmem:[%s2514 + $0x70] sm:$0xf]
      %v2544 = vld [vmem:[%s2514 + $0x74] sm:$0xf]
      %v2545 = vld [vmem:[%s2514 + $0x78] sm:$0xf]
      %v2546 = vld [vmem:[%s2514 + $0x7c] sm:$0xf]
      %v2547 = vld [vmem:[%s2514 + $0x80] sm:$0xf]
      %v2548 = vld [vmem:[%s2514 + $0x84] sm:$0xf]
      %v2549 = vld [vmem:[%s2514 + $0x88] sm:$0xf]
      %v2550 = vld [vmem:[%s2514 + $0x8c] sm:$0xf]
      %v2551 = vld [vmem:[%s2514 + $0x90] sm:$0xf]
      %v2552 = vld [vmem:[%s2514 + $0x94] sm:$0xf]
      %v2553 = vld [vmem:[%s2514 + $0x98] sm:$0xf]
      %v2554 = vld [vmem:[%s2514 + $0x9c] sm:$0xf]
      %v2555 = vld [vmem:[%s2514 + $0xa0] sm:$0xf]
      %v2556 = vld [vmem:[%s2514 + $0xa4] sm:$0xf]
      %v2557 = vld [vmem:[%s2514 + $0xa8] sm:$0xf]
      %v2558 = vld [vmem:[%s2514 + $0xac] sm:$0xf]
      %v2559 = vld [vmem:[%s2514 + $0xb0] sm:$0xf]
      %v2560 = vld [vmem:[%s2514 + $0xb4] sm:$0xf]
      %v2561 = vld [vmem:[%s2514 + $0xb8] sm:$0xf]
      %v2562 = vld [vmem:[%s2514 + $0xbc] sm:$0xf]
      %v2563 = vpack.c.b16 %v2388, %v2386
      %v2564 = vpack.c.b16 %v2500, %v2498
      %v2565 = vpack.c.b16 %v2501, %v2499
      %v2566 = vpack.c.b16 %v2392, %v2390
      %v2567 = vpack.c.b16 %v2504, %v2502
      %v2568 = vpack.c.b16 %v2505, %v2503
      %v2569 = vpack.c.b16 %v2396, %v2394
      %v2570 = vpack.c.b16 %v2508, %v2506
      %v2571 = vpack.c.b16 %v2509, %v2507
      %v2572 = vpack.c.b16 %v2400, %v2398
      %v2573 = vpack.c.b16 %v2512, %v2510
      %v2574 = vpack.c.b16 %v2513, %v2511
      %v2635 = vunpack.c.l.b16 %v2515
      %v2636 = vunpack.c.l.b16 %v2516
      %v2637 = vunpack.c.l.b16 %v2517
      %v2638 = vunpack.c.l.b16 %v2518
      %v2639 = vunpack.c.l.b16 %v2519
      %v2640 = vunpack.c.l.b16 %v2520
      %v2641 = vunpack.c.l.b16 %v2521
      %v2642 = vunpack.c.l.b16 %v2522
      %v2643 = vunpack.c.l.b16 %v2523
      %v2644 = vunpack.c.l.b16 %v2524
      %v2645 = vunpack.c.l.b16 %v2525
      %v2646 = vunpack.c.l.b16 %v2526
      %v2647 = vunpack.c.l.b16 %v2527
      %v2648 = vunpack.c.l.b16 %v2528
      %v2649 = vunpack.c.l.b16 %v2529
      %v2650 = vunpack.c.l.b16 %v2530
      %v2651 = vunpack.c.l.b16 %v2531
      %v2652 = vunpack.c.l.b16 %v2532
      %v2653 = vunpack.c.l.b16 %v2533
      %v2654 = vunpack.c.l.b16 %v2534
      %v2655 = vunpack.c.l.b16 %v2535
      %v2656 = vunpack.c.l.b16 %v2536
      %v2657 = vunpack.c.l.b16 %v2537
      %v2658 = vunpack.c.l.b16 %v2538
      %v2659 = vunpack.c.l.b16 %v2539
      %v2660 = vunpack.c.l.b16 %v2540
      %v2661 = vunpack.c.l.b16 %v2541
      %v2662 = vunpack.c.l.b16 %v2542
      %v2663 = vunpack.c.l.b16 %v2543
      %v2664 = vunpack.c.l.b16 %v2544
      %v2665 = vunpack.c.l.b16 %v2545
      %v2666 = vunpack.c.l.b16 %v2546
      %v2667 = vunpack.c.l.b16 %v2547
      %v2668 = vunpack.c.l.b16 %v2548
      %v2669 = vunpack.c.l.b16 %v2549
      %v2670 = vunpack.c.l.b16 %v2550
      %v2671 = vunpack.c.l.b16 %v2551
      %v2672 = vunpack.c.l.b16 %v2552
      %v2673 = vunpack.c.l.b16 %v2553
      %v2674 = vunpack.c.l.b16 %v2554
      %v2675 = vunpack.c.l.b16 %v2555
      %v2676 = vunpack.c.l.b16 %v2556
      %v2677 = vunpack.c.l.b16 %v2557
      %v2678 = vunpack.c.l.b16 %v2558
      %v2679 = vunpack.c.l.b16 %v2559
      %v2680 = vunpack.c.l.b16 %v2560
      %v2681 = vunpack.c.l.b16 %v2561
      %v2682 = vunpack.c.l.b16 %v2562
      %v2683 = vpack.c.b16 %v2636, %v2635
      %v2684 = vpack.c.b16 %v2638, %v2637
      %v2685 = vpack.c.b16 %v2640, %v2639
      %v2686 = vpack.c.b16 %v2642, %v2641
      %v2687 = vpack.c.b16 %v2644, %v2643
      %v2688 = vpack.c.b16 %v2646, %v2645
      %v2689 = vpack.c.b16 %v2648, %v2647
      %v2690 = vpack.c.b16 %v2650, %v2649
      %v2691 = vpack.c.b16 %v2652, %v2651
      %v2692 = vpack.c.b16 %v2654, %v2653
      %v2693 = vpack.c.b16 %v2656, %v2655
      %v2694 = vpack.c.b16 %v2658, %v2657
      %v2695 = vpack.c.b16 %v2660, %v2659
      %v2696 = vpack.c.b16 %v2662, %v2661
      %v2697 = vpack.c.b16 %v2664, %v2663
      %v2698 = vpack.c.b16 %v2666, %v2665
      %v2699 = vpack.c.b16 %v2668, %v2667
      %v2700 = vpack.c.b16 %v2670, %v2669
      %v2701 = vpack.c.b16 %v2672, %v2671
      %v2702 = vpack.c.b16 %v2674, %v2673
      %v2703 = vpack.c.b16 %v2676, %v2675
      %v2704 = vpack.c.b16 %v2678, %v2677
      %v2705 = vpack.c.b16 %v2680, %v2679
      %v2706 = vpack.c.b16 %v2682, %v2681
      %2731 = vmatprep.subr.bf16.mxu0 0
      %2732 = vmatpush1.bf16.msra.mxu0 %v2683
      %2733 = vmatprep.subr.bf16.mxu0 0
      %2734 = vmatpush1.bf16.msra.mxu0 %v2684
      %2735 = vmatprep.subr.bf16.mxu0 0
      %2736 = vmatpush1.bf16.msra.mxu0 %v2685
      %2737 = vmatprep.subr.bf16.mxu0 0
      %2738 = vmatpush1.bf16.msra.mxu0 %v2686
      %2739 = vmatprep.subr.bf16.mxu0 0
      %2740 = vmatpush1.bf16.msra.mxu0 %v2687
      %2741 = vmatprep.subr.bf16.mxu0 0
      %2742 = vmatpush1.bf16.msra.mxu0 %v2688
      %2743 = vmatprep.subr.bf16.mxu0 0
      %2744 = vmatpush1.bf16.msra.mxu0 %v2689
      %2745 = vmatprep.subr.bf16.mxu0 0
      %2746 = vmatpush1.bf16.msra.mxu0 %v2690
      %2747 = vmatprep.subr.bf16.mxu0 0
      %2748 = vmatpush1.bf16.msra.mxu0 %v2691
      %2749 = vmatprep.subr.bf16.mxu0 0
      %2750 = vmatpush1.bf16.msra.mxu0 %v2692
      %2751 = vmatprep.subr.bf16.mxu0 0
      %2752 = vmatpush1.bf16.msra.mxu0 %v2693
      %2753 = vmatprep.subr.bf16.mxu0 0
      %2754 = vmatpush1.bf16.msra.mxu0 %v2694
      %2755 = vmatprep.subr.bf16.mxu0 0
      %2756 = vmatpush1.bf16.msra.mxu0 %v2695
      %2757 = vmatprep.subr.bf16.mxu0 0
      %2758 = vmatpush1.bf16.msra.mxu0 %v2696
      %2759 = vmatprep.subr.bf16.mxu0 0
      %2760 = vmatpush1.bf16.msra.mxu0 %v2697
      %2761 = vmatprep.subr.bf16.mxu0 0
      %2762 = vmatpush1.bf16.msra.mxu0 %v2698
      %2763 = vmatprep.mubr.bf16.mxu0 %v2564
      %2764 = vmatmul.mubr.bf16.gmra.mrb[0].mxu0 %v2563
      %v2765 = vpop.f32.mrb[0].mxu0
      %v2766 = vadd.f32 0.0, %v2765
      %v2767 = vpop.f32.mrb[0].mxu0
      %v2768 = vpop.f32.mrb[0].mxu0
      %v2769 = vadd.f32 0.0, %v2768
      %v2770 = vpop.f32.mrb[0].mxu0
      %2771 = vmatprep.mubr.bf16.mxu0 %v2567
      %2772 = vmatmul.mubr.bf16.gmra.mrb[0].mxu0 %v2566
      %v2773 = vpop.f32.mrb[0].mxu0
      %v2774 = vadd.f32 0.0, %v2773
      %v2775 = vpop.f32.mrb[0].mxu0
      %v2776 = vpop.f32.mrb[0].mxu0
      %v2777 = vadd.f32 0.0, %v2776
      %v2778 = vpop.f32.mrb[0].mxu0
      %2779 = vmatprep.mubr.bf16.mxu0 %v2570
      %2780 = vmatmul.mubr.bf16.gmra.mrb[0].mxu0 %v2569
      %v2781 = vpop.f32.mrb[0].mxu0
      %v2782 = vadd.f32 0.0, %v2781
      %v2783 = vpop.f32.mrb[0].mxu0
      %v2784 = vpop.f32.mrb[0].mxu0
      %v2785 = vadd.f32 0.0, %v2784
      %v2786 = vpop.f32.mrb[0].mxu0
      %2787 = vmatprep.mubr.bf16.mxu0 %v2573
      %2788 = vmatmul.mubr.bf16.gmra.mrb[0].mxu0 %v2572
      %v2789 = vpop.f32.mrb[0].mxu0
      %v2790 = vadd.f32 0.0, %v2789
      %v2791 = vpop.f32.mrb[0].mxu0
      %v2792 = vpop.f32.mrb[0].mxu0
      %v2793 = vadd.f32 0.0, %v2792
      %v2794 = vpop.f32.mrb[0].mxu0
      %2795 = vdwg.mxu0
      %2796 = vmatprep.subr.bf16.mxu0 0
      %2797 = vmatpush1.bf16.msra.mxu0 %v2699
      %2798 = vmatprep.subr.bf16.mxu0 0
      %2799 = vmatpush1.bf16.msra.mxu0 %v2700
      %2800 = vmatprep.subr.bf16.mxu0 0
      %2801 = vmatpush1.bf16.msra.mxu0 %v2701
      %2802 = vmatprep.subr.bf16.mxu0 0
      %2803 = vmatpush1.bf16.msra.mxu0 %v2702
      %2804 = vmatprep.subr.bf16.mxu0 0
      %2805 = vmatpush1.bf16.msra.mxu0 %v2703
      %2806 = vmatprep.subr.bf16.mxu0 0
      %2807 = vmatpush1.bf16.msra.mxu0 %v2704
      %2808 = vmatprep.subr.bf16.mxu0 0
      %2809 = vmatpush1.bf16.msra.mxu0 %v2705
      %2810 = vmatprep.subr.bf16.mxu0 0
      %2811 = vmatpush1.bf16.msra.mxu0 %v2706
      %2812 = vmatprep.subr.bf16.mxu0 0
      %2813 = vmatpush1.bf16.msra.mxu0 0
      %2814 = vmatprep.subr.bf16.mxu0 0
      %2815 = vmatpush1.bf16.msra.mxu0 0
      %2816 = vmatprep.subr.bf16.mxu0 0
      %2817 = vmatpush1.bf16.msra.mxu0 0
      %2818 = vmatprep.subr.bf16.mxu0 0
      %2819 = vmatpush1.bf16.msra.mxu0 0
      %2820 = vmatprep.subr.bf16.mxu0 0
      %2821 = vmatpush1.bf16.msra.mxu0 0
      %2822 = vmatprep.subr.bf16.mxu0 0
      %2823 = vmatpush1.bf16.msra.mxu0 0
      %2824 = vmatprep.subr.bf16.mxu0 0
      %2825 = vmatpush1.bf16.msra.mxu0 0
      %2826 = vmatprep.subr.bf16.mxu0 0
      %2827 = vmatpush1.bf16.msra.mxu0 0
      %2828 = vmatprep.mubr.bf16.mxu0 0
      %2829 = vmatmul.mubr.bf16.gmra.mrb[0].mxu0 %v2565
      %v2830 = vpop.f32.mrb[0].mxu0
      %v2831 = vadd.f32 %v2766, %v2830
      %v2832 = vpop.f32.mrb[0].mxu0
      %v2833 = vpop.f32.mrb[0].mxu0
      %v2834 = vadd.f32 %v2769, %v2833
      %v2835 = vpop.f32.mrb[0].mxu0
      %2836 = vmatprep.mubr.bf16.mxu0 0
      %2837 = vmatmul.mubr.bf16.gmra.mrb[0].mxu0 %v2568
      %v2838 = vpop.f32.mrb[0].mxu0
      %v2839 = vadd.f32 %v2774, %v2838
      %v2840 = vpop.f32.mrb[0].mxu0
      %v2841 = vpop.f32.mrb[0].mxu0
      %v2842 = vadd.f32 %v2777, %v2841
      %v2843 = vpop.f32.mrb[0].mxu0
      %2844 = vmatprep.mubr.bf16.mxu0 0
      %2845 = vmatmul.mubr.bf16.gmra.mrb[0].mxu0 %v2571
      %v2846 = vpop.f32.mrb[0].mxu0
      %v2847 = vadd.f32 %v2782, %v2846
      %v2848 = vpop.f32.mrb[0].mxu0
      %v2849 = vpop.f32.mrb[0].mxu0
      %v2850 = vadd.f32 %v2785, %v2849
      %v2851 = vpop.f32.mrb[0].mxu0
      %2852 = vmatprep.mubr.bf16.mxu0 0
      %2853 = vmatmul.mubr.bf16.gmra.mrb[0].mxu0 %v2574
      %v2854 = vpop.f32.mrb[0].mxu0
      %v2855 = vadd.f32 %v2790, %v2854
      %v2856 = vpop.f32.mrb[0].mxu0
      %v2857 = vpop.f32.mrb[0].mxu0
      %v2858 = vadd.f32 %v2793, %v2857
      %v2859 = vpop.f32.mrb[0].mxu0
      %2860 = vdwg.mxu0
      %v2861 = vadd.f32 %v2315, %v2831
      %v2862 = vadd.f32 %v2318, %v2834
      %v2863 = vadd.f32 %v2323, %v2839
      %v2864 = vadd.f32 %v2326, %v2842
      %v2865 = vadd.f32 %v2331, %v2847
      %v2866 = vadd.f32 %v2334, %v2850
      %v2867 = vadd.f32 %v2339, %v2855
      %v2868 = vadd.f32 %v2342, %v2858
      %v2870 = vlaneseq
      %v2871 = vshrl.u32 %v2870, 7
      %v2872 = vsub.s32 0, %v2871
      %v2873 = vrot.slane %v363, %v2872
      %v2875 = vmul.f32 %v2861, %v2873
      %v2876 = vmul.f32 %v2862, %v2873
      %v2877 = vmul.f32 %v2863, %v2873
      %v2878 = vmul.f32 %v2864, %v2873
      %v2879 = vmul.f32 %v2865, %v2873
      %v2880 = vmul.f32 %v2866, %v2873
      %v2881 = vmul.f32 %v2867, %v2873
      %v2882 = vmul.f32 %v2868, %v2873
      %v2884 = vlaneseq
      %v2885 = vshrl.u32 %v2884, 7
      %v2886 = vsub.s32 0, %v2885
      %v2887 = vrot.slane %v364, %v2886
      %v2889 = vadd.f32 %v2875, %v2887
      %v2890 = vadd.f32 %v2876, %v2887
      %v2891 = vadd.f32 %v2877, %v2887
      %v2892 = vadd.f32 %v2878, %v2887
      %v2893 = vadd.f32 %v2879, %v2887
      %v2894 = vadd.f32 %v2880, %v2887
      %v2895 = vadd.f32 %v2881, %v2887
      %v2896 = vadd.f32 %v2882, %v2887
      %v2897 = vld [vmem:[%s354] sm:$0xf]
      %v2898 = vld [vmem:[%s354 + $0x8] sm:$0xf]
      %v2899 = vld [vmem:[%s354 + $0x10] sm:$0xf]
      %v2900 = vld [vmem:[%s354 + $0x18] sm:$0xf]
      %v2901 = vld [vmem:[%s354 + $0x20] sm:$0xf]
      %v2902 = vld [vmem:[%s354 + $0x28] sm:$0xf]
      %v2903 = vld [vmem:[%s354 + $0x30] sm:$0xf]
      %v2904 = vld [vmem:[%s354 + $0x38] sm:$0xf]
      %v2905 = vld [vmem:[%s3] sm:$0xf]
      %v2906 = vld [vmem:[%s3 + $0x4] sm:$0xf]
      %v2915 = vunpack.c.l.b16 %v2897
      %v2916 = vunpack.c.l.b16 %v2898
      %v2917 = vunpack.c.l.b16 %v2899
      %v2918 = vunpack.c.l.b16 %v2900
      %v2919 = vunpack.c.l.b16 %v2901
      %v2920 = vunpack.c.l.b16 %v2902
      %v2921 = vunpack.c.l.b16 %v2903
      %v2922 = vunpack.c.l.b16 %v2904
      %v2923 = vpack.c.b16 %v2916, %v2915
      %v2924 = vpack.c.b16 %v2918, %v2917
      %v2925 = vpack.c.b16 %v2920, %v2919
      %v2926 = vpack.c.b16 %v2922, %v2921
      %v2929 = vunpack.c.l.b16 %v2905
      %v2930 = vunpack.c.l.b16 %v2906
      %v2931 = vpack.c.b16 %v2930, %v2929
      %v2934 = vsel %vm588, %v2923, 0
      %v2937 = vsel %vm588, %v2924, 0
      %v2940 = vsel %vm588, %v2925, 0
      %v2943 = vsel %vm588, %v2926, 0
      %2945 = vmatprep.subr.bf16.mxu0 0
      %2946 = vmatpush1.bf16.msra.mxu0 %v2931
      %2947 = vmatprep.subr.bf16.mxu0 0
      %2948 = vmatpush1.bf16.msra.mxu0 0
      %2949 = vmatprep.subr.bf16.mxu0 0
      %2950 = vmatpush1.bf16.msra.mxu0 0
      %2951 = vmatprep.subr.bf16.mxu0 0
      %2952 = vmatpush1.bf16.msra.mxu0 0
      %2953 = vmatprep.subr.bf16.mxu0 0
      %2954 = vmatpush1.bf16.msra.mxu0 0
      %2955 = vmatprep.subr.bf16.mxu0 0
      %2956 = vmatpush1.bf16.msra.mxu0 0
      %2957 = vmatprep.subr.bf16.mxu0 0
      %2958 = vmatpush1.bf16.msra.mxu0 0
      %2959 = vmatprep.subr.bf16.mxu0 0
      %2960 = vmatpush1.bf16.msra.mxu0 0
      %2961 = vmatprep.subr.bf16.mxu0 0
      %2962 = vmatpush1.bf16.msra.mxu0 0
      %2963 = vmatprep.subr.bf16.mxu0 0
      %2964 = vmatpush1.bf16.msra.mxu0 0
      %2965 = vmatprep.subr.bf16.mxu0 0
      %2966 = vmatpush1.bf16.msra.mxu0 0
      %2967 = vmatprep.subr.bf16.mxu0 0
      %2968 = vmatpush1.bf16.msra.mxu0 0
      %2969 = vmatprep.subr.bf16.mxu0 0
      %2970 = vmatpush1.bf16.msra.mxu0 0
      %2971 = vmatprep.subr.bf16.mxu0 0
      %2972 = vmatpush1.bf16.msra.mxu0 0
      %2973 = vmatprep.subr.bf16.mxu0 0
      %2974 = vmatpush1.bf16.msra.mxu0 0
      %2975 = vmatprep.subr.bf16.mxu0 0
      %2976 = vmatpush1.bf16.msra.mxu0 0
      %2977 = vmatprep.mubr.bf16.mxu0 0
      %2978 = vmatmul.mubr.bf16.gmra.mrb[0].mxu0 %v2934
      %v2979 = vpop.f32.mrb[0].mxu0
      %v2980 = vadd.f32 0.0, %v2979
      %v2981 = vpop.f32.mrb[0].mxu0
      %v2982 = vpop.f32.mrb[0].mxu0
      %v2983 = vadd.f32 0.0, %v2982
      %v2984 = vpop.f32.mrb[0].mxu0
      %2985 = vmatprep.mubr.bf16.mxu0 0
      %2986 = vmatmul.mubr.bf16.gmra.mrb[0].mxu0 %v2937
      %v2987 = vpop.f32.mrb[0].mxu0
      %v2988 = vadd.f32 0.0, %v2987
      %v2989 = vpop.f32.mrb[0].mxu0
      %v2990 = vpop.f32.mrb[0].mxu0
      %v2991 = vadd.f32 0.0, %v2990
      %v2992 = vpop.f32.mrb[0].mxu0
      %2993 = vmatprep.mubr.bf16.mxu0 0
      %2994 = vmatmul.mubr.bf16.gmra.mrb[0].mxu0 %v2940
      %v2995 = vpop.f32.mrb[0].mxu0
      %v2996 = vadd.f32 0.0, %v2995
      %v2997 = vpop.f32.mrb[0].mxu0
      %v2998 = vpop.f32.mrb[0].mxu0
      %v2999 = vadd.f32 0.0, %v2998
      %v3000 = vpop.f32.mrb[0].mxu0
      %3001 = vmatprep.mubr.bf16.mxu0 0
      %3002 = vmatmul.mubr.bf16.gmra.mrb[0].mxu0 %v2943
      %v3003 = vpop.f32.mrb[0].mxu0
      %v3004 = vadd.f32 0.0, %v3003
      %v3005 = vpop.f32.mrb[0].mxu0
      %v3006 = vpop.f32.mrb[0].mxu0
      %v3007 = vadd.f32 0.0, %v3006
      %v3008 = vpop.f32.mrb[0].mxu0
      %3009 = vdwg.mxu0
      %v3010 = vld [vmem:[%s8] sm:$0x1]
      %v3012 = vlaneseq
      %v3013 = vshrl.u32 %v3012, 7
      %v3014 = vsub.s32 0, %v3013
      %v3015 = vrot.slane %v3010, %v3014
      %v3017 = vmul.f32 %v2980, %v3015
      %v3018 = vmul.f32 %v2983, %v3015
      %v3019 = vmul.f32 %v2988, %v3015
      %v3020 = vmul.f32 %v2991, %v3015
      %v3021 = vmul.f32 %v2996, %v3015
      %v3022 = vmul.f32 %v2999, %v3015
      %v3023 = vmul.f32 %v3004, %v3015
      %v3024 = vmul.f32 %v3007, %v3015
      %v3025 = vld [vmem:[%s9] sm:$0x1]
      %v3027 = vlaneseq
      %v3028 = vshrl.u32 %v3027, 7
      %v3029 = vsub.s32 0, %v3028
      %v3030 = vrot.slane %v3025, %v3029
      %v3032 = vadd.f32 %v3017, %v3030
      %v3033 = vadd.f32 %v3018, %v3030
      %v3034 = vadd.f32 %v3019, %v3030
      %v3035 = vadd.f32 %v3020, %v3030
      %v3036 = vadd.f32 %v3021, %v3030
      %v3037 = vadd.f32 %v3022, %v3030
      %v3038 = vadd.f32 %v3023, %v3030
      %v3039 = vadd.f32 %v3024, %v3030
      %v3040 = vadd.f32 %v2889, %v3032
      %v3041 = vadd.f32 %v2890, %v3033
      %v3042 = vadd.f32 %v2891, %v3034
      %v3043 = vadd.f32 %v2892, %v3035
      %v3044 = vadd.f32 %v2893, %v3036
      %v3045 = vadd.f32 %v2894, %v3037
      %v3046 = vadd.f32 %v2895, %v3038
      %v3047 = vadd.f32 %v2896, %v3039
      %v3048 = vmax.f32 %v3040, 0.0
      %v3049 = vmax.f32 %v3041, 0.0
      %v3050 = vmax.f32 %v3042, 0.0
      %v3051 = vmax.f32 %v3043, 0.0
      %v3052 = vmax.f32 %v3044, 0.0
      %v3053 = vmax.f32 %v3045, 0.0
      %v3054 = vmax.f32 %v3046, 0.0
      %v3055 = vmax.f32 %v3047, 0.0
      %3056 = vst [vmem:[%s359] sm:$0xff] %v3048
      %3057 = vst [vmem:[%s359 + $0x8] sm:$0xff] %v3049
      %3058 = vst [vmem:[%s359 + $0x10] sm:$0xff] %v3050
      %3059 = vst [vmem:[%s359 + $0x18] sm:$0xff] %v3051
      %3060 = vst [vmem:[%s359 + $0x20] sm:$0xff] %v3052
      %3061 = vst [vmem:[%s359 + $0x28] sm:$0xff] %v3053
      %3062 = vst [vmem:[%s359 + $0x30] sm:$0xff] %v3054
      %3063 = vst [vmem:[%s359 + $0x38] sm:$0xff] %v3055
      %p3064 = scmp.lt.s32.totalorder %s21, 1
      %s3065 = scalar_select %p3064, %s21, 1
      %s3066 = smul.addr %s3065, 8
      %s3067 = smul.addr %s3066, 8
      %s3068 = scalar_lea.vmem %s10, %s3067
      // Predicated region
      $region61: #{basic_block_forward.1} parent=59 // pred_check
        %p3069 = pneg %p254
      $region62: #{basic_block_forward.1} parent=59 // pred_check_branch
        %3071 = sbr.rel (%p3069) target = $region64
      $region63: #{basic_block_forward.1} parent=59 // pred_region
        _
      $region64: #{basic_block_forward.1} parent=59 // pred_fallthru
        _
    $region60: #{basic_block_forward.1} parent=5 // pred_fallthru
      _
    %p3072 = scmp.le.s32.totalorder 2, %s16
    // Predicated region
    $region65: #{basic_block_forward.1} parent=5 // pred_check
      %p3073 = pneg %p3072
    $region66: #{basic_block_forward.1} parent=5 // pred_check_branch
      %3075 = sbr.rel (%p3073) target = $region68
    $region67: #{basic_block_forward.1} parent=5 // pred_region
      %s3076 = ssub.s32 %s16, 2
      // Predicated region
      $region69: #{basic_block_forward.1} parent=67 // pred_check
        %p3077 = pneg %p260
      $region70: #{basic_block_forward.1} parent=67 // pred_check_branch
        %3079 = sbr.rel (%p3077) target = $region72
      $region71: #{basic_block_forward.1} parent=67 // pred_region
        %p3080 = scmp.lt.s32.totalorder %s22, 1
        %s3081 = scalar_select %p3080, %s22, 1
        %s3082 = smul.addr %s3081, 8
        %s3083 = smul.addr %s3082, 8
        %s3084 = scalar_lea.vmem %s10, %s3083
      $region72: #{basic_block_forward.1} parent=67 // pred_fallthru
        _
    $region68: #{basic_block_forward.1} parent=5 // pred_fallthru
      _
  $region6: #{basic_block_forward.1} parent=0 // loop_footer
    %s20 = sadd.s32 1, %s16
  $region7: #{basic_block_forward.1} parent=0 // loop_footer_branch
    %15 = sbr.rel target = $region3
  $region8: #{basic_block_forward.1} parent=0 // loop_exit
    _

</llo_original>
